<compile_context>
chip_gen: v6e
topology: v6e:2x2x1
jax: 0.10.0
libtpu: 0.0.40
codegen_flags: <defaults>
</compile_context>

<pallas_src>
import functools
import math

import jax
import jax.numpy as jnp
from jax.experimental import pallas as pl
from jax.experimental.pallas import tpu as pltpu

HIDDEN = 256          # LSTMCell hidden size
HEAD_W = 128          # lane-dense fused actor+critic head width
B_FIXED = 32          # required by x.view(-1, x.size(0)) + LSTMCell(32, .)
NC = 2                # batch split (32 -> 16 rows per core) for megacore
B_HALF = B_FIXED // NC


# --------------------------- kernel 1: precompute ---------------------------
# For all T*B rows: h1 = relu(x@W1+b1); h2 = relu(h1@W2+b2) (dropout = id);
# xg = h2 @ Wih^T + (b_ih + b_hh).  Large-M, lane-dense, fully parallel.

def _precompute_kernel(x_ref, w1_ref, w2_ref, wih_ref, b12_ref, blstm_ref,
                       xg_ref):
    f32, bf16 = jnp.float32, jnp.bfloat16
    h1 = jnp.maximum(
        jnp.dot(x_ref[...].astype(bf16), w1_ref[...],
                preferred_element_type=f32) + b12_ref[0:1, :], 0.0)
    # TODO(synk): train-mode dropout (p=0.4) after linear_2's ReLU would use
    # pltpu.prng_seed + pltpu.prng_random_bits; eval-mode dropout is identity.
    h2 = jnp.maximum(
        jnp.dot(h1.astype(bf16), w2_ref[...],
                preferred_element_type=f32) + b12_ref[1:2, :], 0.0)
    # x.view(-1, 32) is the identity reshape when batch == 32 (asserted).
    xg_ref[...] = (jnp.dot(h2.astype(bf16), wih_ref[...],
                           preferred_element_type=f32) + blstm_ref[...])


# --------------------------- kernel 2: recurrence ---------------------------
# grid = (NC, T).  Weights resident (constant index_maps); hx/cx in VMEM
# scratch; per-step actor/critic head written as one lane-dense 128-wide block.

def _recurrent_kernel(xg_ref, hx0_ref, cx0_ref, whh_ref, wha_ref, whc_ref,
                      bhead_ref, head_ref, hxo_ref, cxo_ref, hx_s, cx_s):
    f32, bf16 = jnp.float32, jnp.bfloat16
    H = HIDDEN
    c = pl.program_id(0)
    t = pl.program_id(1)

    @pl.when(t == 0)
    def _():
        hx_s[c] = hx0_ref[...]
        cx_s[c] = cx0_ref[...]

    hx_prev = hx_s[c]
    cx_prev = cx_s[c]

    # gates = precomputed x-projection + hx @ Whh^T   (exact K=256 MXU pass).
    gates = xg_ref[...] + jnp.dot(hx_prev.astype(bf16), whh_ref[...],
                                  preferred_element_type=f32)

    # PyTorch LSTMCell gate order (i, f, g, o); per-gate slices consumed
    # immediately to keep f32 vreg liveness low.
    cx_new = (jax.nn.sigmoid(gates[:, H:2 * H]) * cx_prev
              + jax.nn.sigmoid(gates[:, 0:H]) * jnp.tanh(gates[:, 2 * H:3 * H]))
    hx_new = jax.nn.sigmoid(gates[:, 3 * H:4 * H]) * jnp.tanh(cx_new)
    hx_s[c] = hx_new
    cx_s[c] = cx_new

    # actor(hx) + critic(cx) as two K=256 dots into one lane-dense 128 block.
    # TODO(synk): actor_drop / critic_drop are eval-mode identities here.
    head_ref[...] = (jnp.dot(hx_new.astype(bf16), wha_ref[...],
                             preferred_element_type=f32)
                     + jnp.dot(cx_new.astype(bf16), whc_ref[...],
                               preferred_element_type=f32)
                     + bhead_ref[...])

    @pl.when(t == pl.num_programs(1) - 1)
    def _():
        hxo_ref[...] = hx_new
        cxo_ref[...] = cx_new


# --------------------------------- wrapper ----------------------------------

def _rollout_impl(xs, hx, cx, packed, num_actions):
    (w1p, w2p, wihp, b12, blstm, whh_t, wha, whc, bhead) = packed
    T, B, num_inputs = xs.shape
    assert B == B_FIXED, "LSTMCell(32, 256) + x.view(-1, B) requires batch == 32"
    rows = T * B
    x2 = xs.reshape(rows, num_inputs)

    # ---- stage 1: batched, non-recurrent projection (large M, lane-dense) ----
    t_chunk = math.gcd(T, 8)
    m_tile = B * t_chunk
    # TODO(synk): for very long rollouts, stage xg in bf16 to halve HBM traffic
    # (matters most against v7x's 64 MiB VMEM / scoped limits).
    xg = pl.pallas_call(
        _precompute_kernel,
        out_shape=jax.ShapeDtypeStruct((rows, 4 * HIDDEN), jnp.float32),
        grid=(rows // m_tile,),
        in_specs=[
            pl.BlockSpec((m_tile, num_inputs), lambda i: (i, 0)),
            pl.BlockSpec((num_inputs, 128), lambda i: (0, 0)),
            pl.BlockSpec((128, 128), lambda i: (0, 0)),
            pl.BlockSpec((128, 4 * HIDDEN), lambda i: (0, 0)),
            pl.BlockSpec((2, 128), lambda i: (0, 0)),
            pl.BlockSpec((1, 4 * HIDDEN), lambda i: (0, 0)),
        ],
        out_specs=pl.BlockSpec((m_tile, 4 * HIDDEN), lambda i: (i, 0)),
        compiler_params=pltpu.CompilerParams(
            dimension_semantics=("parallel",)),
    )(x2, w1p, w2p, wihp, b12, blstm)

    # ---- stage 2: recurrent LSTM + heads, weights resident across T steps ----
    cost = pl.CostEstimate(
        flops=2 * rows * (HIDDEN * 4 * HIDDEN + 2 * HIDDEN * HEAD_W),
        transcendentals=5 * rows * HIDDEN,
        bytes_accessed=(rows * 4 * HIDDEN * 4          # xg stream
                        + HIDDEN * 4 * HIDDEN * 2      # whh (resident)
                        + 2 * HIDDEN * HEAD_W * 2      # head weights
                        + rows * HEAD_W * 4            # head out
                        + 4 * B * HIDDEN * 4))         # hx/cx in + out

    head, hx_n, cx_n = pl.pallas_call(
        _recurrent_kernel,
        out_shape=(
            jax.ShapeDtypeStruct((rows, HEAD_W), jnp.float32),
            jax.ShapeDtypeStruct((B, HIDDEN), jnp.float32),
            jax.ShapeDtypeStruct((B, HIDDEN), jnp.float32),
        ),
        grid=(NC, T),
        in_specs=[
            pl.BlockSpec((B_HALF, 4 * HIDDEN), lambda c, t: (t * NC + c, 0)),
            pl.BlockSpec((B_HALF, HIDDEN), lambda c, t: (c, 0)),
            pl.BlockSpec((B_HALF, HIDDEN), lambda c, t: (c, 0)),
            pl.BlockSpec((HIDDEN, 4 * HIDDEN), lambda c, t: (0, 0)),
            pl.BlockSpec((HIDDEN, HEAD_W), lambda c, t: (0, 0)),
            pl.BlockSpec((HIDDEN, HEAD_W), lambda c, t: (0, 0)),
            pl.BlockSpec((1, HEAD_W), lambda c, t: (0, 0)),
        ],
        out_specs=(
            pl.BlockSpec((B_HALF, HEAD_W), lambda c, t: (t * NC + c, 0)),
            pl.BlockSpec((B_HALF, HIDDEN), lambda c, t: (c, 0)),
            pl.BlockSpec((B_HALF, HIDDEN), lambda c, t: (c, 0)),
        ),
        scratch_shapes=[pltpu.VMEM((NC, B_HALF, HIDDEN), jnp.float32),
                        pltpu.VMEM((NC, B_HALF, HIDDEN), jnp.float32)],
        compiler_params=pltpu.CompilerParams(
            dimension_semantics=("parallel", "arbitrary")),
        cost_estimate=cost,
    )(xg, hx, cx, whh_t, wha, whc, bhead)

    head = head.reshape(T, B, HEAD_W)
    actors = head[:, :, 0:num_actions]
    critics = head[:, :, num_actions:num_actions + 1]
    return actors, critics, hx_n, cx_n


@functools.partial(jax.jit, static_argnames=("num_actions",))
def reduction_actor_critic_forward(x, hx, cx, packed, num_actions):
    """Single step — matches the PyTorch module forward (eval mode)."""
    actors, critics, hx_n, cx_n = _rollout_impl(x[None], hx, cx, packed,
                                                num_actions)
    return actors[0], critics[0], hx_n, cx_n


@functools.partial(jax.jit, static_argnames=("num_actions",))
def reduction_actor_critic_rollout(xs, hx, cx, packed, num_actions):
    """Apply forward() T times with hx/cx threaded through, weights resident."""
    return _rollout_impl(xs, hx, cx, packed, num_actions)


# ----------------------------- parameter setup ------------------------------

def init_raw_params(key, num_inputs, num_actions):
    """PyTorch-layout f32 parameters, initialized like _initialize_weights."""
    k1, k2, k3, k4, k5, k6 = jax.random.split(key, 6)

    def xavier(k, out_f, in_f):
        bound = (6.0 / (in_f + out_f)) ** 0.5
        return jax.random.uniform(k, (out_f, in_f), jnp.float32, -bound, bound)

    w1 = xavier(k1, 64, num_inputs)
    w2 = xavier(k2, 32, 64)
    wa = xavier(k3, num_actions, HIDDEN)
    wc = xavier(k4, 1, HIDDEN)
    kb = 1.0 / (HIDDEN ** 0.5)
    wih = jax.random.uniform(k5, (4 * HIDDEN, 32), jnp.float32, -kb, kb)
    whh = jax.random.uniform(k6, (4 * HIDDEN, HIDDEN), jnp.float32, -kb, kb)
    z = jnp.zeros
    return (w1, z((64,), jnp.float32),
            w2, z((32,), jnp.float32),
            wih, whh, z((4 * HIDDEN,), jnp.float32), z((4 * HIDDEN,), jnp.float32),
            wa, z((num_actions,), jnp.float32),
            wc, z((1,), jnp.float32))


def pack_params(raw, num_actions):
    """Kernel-ready params: bf16 weights, 128-lane padded intermediates."""
    (w1, b1, w2, b2, wih, whh, b_ih, b_hh, wa, ba, wc, bc) = raw
    H = HIDDEN
    assert num_actions + 1 <= HEAD_W, "fused head assumes num_actions + 1 <= 128"
    bf16 = jnp.bfloat16
    num_inputs = w1.shape[1]

    # linear_1 / linear_2: transposed + zero-padded to 128 output lanes.
    w1p = jnp.zeros((num_inputs, 128), jnp.float32).at[:, :64].set(w1.T).astype(bf16)
    w2p = jnp.zeros((128, 128), jnp.float32).at[:64, :32].set(w2.T).astype(bf16)
    b12 = jnp.zeros((2, 128), jnp.float32).at[0, :64].set(b1).at[1, :32].set(b2)

    # LSTM input projection (K padded 32 -> 128 to match the padded h2) and
    # combined bias; gate columns stay in PyTorch's natural (i, f, g, o) order.
    wihp = jnp.zeros((128, 4 * H), jnp.float32).at[:32, :].set(wih.T).astype(bf16)
    blstm = (b_ih + b_hh)[None, :]                               # (1, 1024)

    # Recurrent weight: exact K=256 MXU pass.
    whh_t = whh.T.astype(bf16)                                   # (256, 1024)

    # actor(hx) / critic(cx) heads as two lane-dense (256, 128) weights.
    wha = jnp.zeros((H, HEAD_W), jnp.float32).at[:, :num_actions].set(wa.T).astype(bf16)
    whc = jnp.zeros((H, HEAD_W), jnp.float32).at[:, num_actions:num_actions + 1].set(wc.T).astype(bf16)
    bhead = (jnp.zeros((1, HEAD_W), jnp.float32)
             .at[0, :num_actions].set(ba).at[0, num_actions].set(bc[0]))

    return (w1p, w2p, wihp, b12, blstm, whh_t, wha, whc, bhead)


# --------------------------------- reference ---------------------------------

def _bf(a):
    """Mirror the kernel's bf16 rounding at matmul boundaries."""
    return a.astype(jnp.bfloat16).astype(jnp.float32)


def _reference_step(x, hx, cx, raw):
    (w1, b1, w2, b2, wih, whh, b_ih, b_hh, wa, ba, wc, bc) = raw
    H = HIDDEN
    h1 = jnp.maximum(_bf(x) @ _bf(w1).T + b1, 0.0)
    h2 = jnp.maximum(_bf(h1) @ _bf(w2).T + b2, 0.0)
    lstm_in = h2.reshape(-1, x.shape[0])          # identity when batch == 32
    gates = _bf(lstm_in) @ _bf(wih).T + _bf(hx) @ _bf(whh).T + b_ih + b_hh
    i = jax.nn.sigmoid(gates[:, 0:H])
    f = jax.nn.sigmoid(gates[:, H:2 * H])
    g = jnp.tanh(gates[:, 2 * H:3 * H])
    o = jax.nn.sigmoid(gates[:, 3 * H:4 * H])
    cx_n = f * cx + i * g
    hx_n = o * jnp.tanh(cx_n)
    actor = _bf(hx_n) @ _bf(wa).T + ba
    critic = _bf(cx_n) @ _bf(wc).T + bc
    return actor, critic, hx_n, cx_n


if __name__ == "__main__":
    key = jax.random.PRNGKey(0)
    num_inputs, num_actions, batch, T = 16, 8, 32, 8   # batch must be 32

    kp, kx, kh, kc = jax.random.split(key, 4)
    raw = init_raw_params(kp, num_inputs, num_actions)
    packed = pack_params(raw, num_actions)

    xs = jax.random.normal(kx, (T, batch, num_inputs), jnp.float32)
    hx = jax.random.normal(kh, (batch, HIDDEN), jnp.float32)
    cx = jax.random.normal(kc, (batch, HIDDEN), jnp.float32)

    tol = dict(rtol=1e-2, atol=1e-2)

    # ---- single-step forward (the module's forward signature) ----
    actor, critic, hx1, cx1 = jax.block_until_ready(
        reduction_actor_critic_forward(xs[0], hx, cx, packed, num_actions))
    ra, rc, rh, rcx = _reference_step(xs[0], hx, cx, raw)
    assert jnp.allclose(actor, ra, **tol), float(jnp.max(jnp.abs(actor - ra)))
    assert jnp.allclose(critic, rc, **tol), float(jnp.max(jnp.abs(critic - rc)))
    assert jnp.allclose(hx1, rh, **tol), float(jnp.max(jnp.abs(hx1 - rh)))
    assert jnp.allclose(cx1, rcx, **tol), float(jnp.max(jnp.abs(cx1 - rcx)))

    # ---- T-step rollout with the in-kernel time loop (weights resident) ----
    actors, critics, hxT, cxT = jax.block_until_ready(
        reduction_actor_critic_rollout(xs, hx, cx, packed, num_actions))
    rhx, rcxs = hx, cx
    for t in range(T):
        ra, rc, rhx, rcxs = _reference_step(xs[t], rhx, rcxs, raw)
        assert jnp.allclose(actors[t], ra, **tol), (t, float(jnp.max(jnp.abs(actors[t] - ra))))
        assert jnp.allclose(critics[t], rc, **tol), (t, float(jnp.max(jnp.abs(critics[t] - rc))))
    assert jnp.allclose(hxT, rhx, **tol), float(jnp.max(jnp.abs(hxT - rhx)))
    assert jnp.allclose(cxT, rcxs, **tol), float(jnp.max(jnp.abs(cxT - rcxs)))

    print("KERNEL_OK")
</pallas_src>

<mosaic_0001>
module attributes {stable_mosaic.version = 11 : i64} {
  func.func @_precompute_kernel(%arg0: i32, %arg1: memref<32x16xf32, #tpu.memory_space<vmem>>, %arg2: memref<16x128xbf16, #tpu.memory_space<vmem>>, %arg3: memref<128x128xbf16, #tpu.memory_space<vmem>>, %arg4: memref<128x1024xbf16, #tpu.memory_space<vmem>>, %arg5: memref<2x128xf32, #tpu.memory_space<vmem>>, %arg6: memref<1x1024xf32, #tpu.memory_space<vmem>>, %arg7: memref<32x1024xf32, #tpu.memory_space<vmem>>) attributes {dimension_semantics = [#tpu.dimension_semantics<parallel>], iteration_bounds = array<i64: 1>, scalar_prefetch = 0 : i64, scratch_operands = 0 : i64, tpu.core_type = #tpu.core_type<tc>, window_params = [{transform_indices = @transform_0, window_bounds = array<i64: 32, 16>}, {pipeline_mode = #tpu.pipeline_mode<synchronous>, transform_indices = @transform_1, window_bounds = array<i64: 16, 128>}, {pipeline_mode = #tpu.pipeline_mode<synchronous>, transform_indices = @transform_2, window_bounds = array<i64: 128, 128>}, {pipeline_mode = #tpu.pipeline_mode<synchronous>, transform_indices = @transform_3, window_bounds = array<i64: 128, 1024>}, {pipeline_mode = #tpu.pipeline_mode<synchronous>, transform_indices = @transform_4, window_bounds = array<i64: 2, 128>}, {pipeline_mode = #tpu.pipeline_mode<synchronous>, transform_indices = @transform_5, window_bounds = array<i64: 1, 1024>}, {transform_indices = @transform_6, window_bounds = array<i64: 32, 1024>}]} {
    %c0 = arith.constant 0 : index
    %c0_0 = arith.constant 0 : index
    %0 = vector.load %arg1[%c0, %c0_0] : memref<32x16xf32, #tpu.memory_space<vmem>>, vector<32x16xf32>
    %1 = arith.truncf %0 : vector<32x16xf32> to vector<32x16xbf16>
    %c0_1 = arith.constant 0 : index
    %c0_2 = arith.constant 0 : index
    %2 = vector.load %arg2[%c0_1, %c0_2] : memref<16x128xbf16, #tpu.memory_space<vmem>>, vector<16x128xbf16>
    %cst = arith.constant dense<0.000000e+00> : vector<32x128xf32>
    %3 = tpu.matmul %1, %2, %cst {dimension_numbers = #tpu.dot_dimension_numbers<[1], [0], [0], [1], [0, 0, 1, 1], [], []>} : vector<32x16xbf16>, vector<16x128xbf16>, vector<32x128xf32> -> vector<32x128xf32>
    %c0_3 = arith.constant 0 : index
    %c0_4 = arith.constant 0 : index
    %4 = vector.load %arg5[%c0_3, %c0_4] : memref<2x128xf32, #tpu.memory_space<vmem>>, vector<1x128xf32>
    %5 = vector.broadcast %4 : vector<1x128xf32> to vector<32x128xf32>
    %6 = arith.addf %3, %5 : vector<32x128xf32>
    %cst_5 = arith.constant 0.000000e+00 : f32
    %7 = vector.broadcast %cst_5 : f32 to vector<32x128xf32>
    %8 = arith.maximumf %6, %7 : vector<32x128xf32>
    %9 = arith.truncf %8 : vector<32x128xf32> to vector<32x128xbf16>
    %c0_6 = arith.constant 0 : index
    %c0_7 = arith.constant 0 : index
    %10 = vector.load %arg3[%c0_6, %c0_7] : memref<128x128xbf16, #tpu.memory_space<vmem>>, vector<128x128xbf16>
    %cst_8 = arith.constant dense<0.000000e+00> : vector<32x128xf32>
    %11 = tpu.matmul %9, %10, %cst_8 {dimension_numbers = #tpu.dot_dimension_numbers<[1], [0], [0], [1], [0, 0, 1, 1], [], []>} : vector<32x128xbf16>, vector<128x128xbf16>, vector<32x128xf32> -> vector<32x128xf32>
    %c1 = arith.constant 1 : index
    %c0_9 = arith.constant 0 : index
    %12 = vector.load %arg5[%c1, %c0_9] : memref<2x128xf32, #tpu.memory_space<vmem>>, vector<1x128xf32>
    %13 = vector.broadcast %12 : vector<1x128xf32> to vector<32x128xf32>
    %14 = arith.addf %11, %13 : vector<32x128xf32>
    %cst_10 = arith.constant 0.000000e+00 : f32
    %15 = vector.broadcast %cst_10 : f32 to vector<32x128xf32>
    %16 = arith.maximumf %14, %15 : vector<32x128xf32>
    %17 = arith.truncf %16 : vector<32x128xf32> to vector<32x128xbf16>
    %c0_11 = arith.constant 0 : index
    %c0_12 = arith.constant 0 : index
    %18 = vector.load %arg4[%c0_11, %c0_12] : memref<128x1024xbf16, #tpu.memory_space<vmem>>, vector<128x1024xbf16>
    %cst_13 = arith.constant dense<0.000000e+00> : vector<32x1024xf32>
    %19 = tpu.matmul %17, %18, %cst_13 {dimension_numbers = #tpu.dot_dimension_numbers<[1], [0], [0], [1], [0, 0, 1, 1], [], []>} : vector<32x128xbf16>, vector<128x1024xbf16>, vector<32x1024xf32> -> vector<32x1024xf32>
    %c0_14 = arith.constant 0 : index
    %c0_15 = arith.constant 0 : index
    %20 = vector.load %arg6[%c0_14, %c0_15] : memref<1x1024xf32, #tpu.memory_space<vmem>>, vector<1x1024xf32>
    %21 = vector.broadcast %20 : vector<1x1024xf32> to vector<32x1024xf32>
    %22 = arith.addf %19, %21 : vector<32x1024xf32>
    %c0_16 = arith.constant 0 : index
    %c0_17 = arith.constant 0 : index
    %23 = vector.load %arg7[%c0_16, %c0_17] : memref<32x1024xf32, #tpu.memory_space<vmem>>, vector<32x1024xf32>
    tpu.vector_store %arg7[%c0_16, %c0_17], %22 {strides = array<i32>} : memref<32x1024xf32, #tpu.memory_space<vmem>>, vector<32x1024xf32>,
    return
  }
  func.func @transform_0(%arg0: i32) -> (i32, i32) {
    %c0_i32 = arith.constant 0 : i32
    %c0_i32_0 = arith.constant 0 : i32
    return %arg0, %c0_i32 : i32, i32
  }
  func.func @transform_1(%arg0: i32) -> (i32, i32) {
    %c0_i32 = arith.constant 0 : i32
    %c0_i32_0 = arith.constant 0 : i32
    %c0_i32_1 = arith.constant 0 : i32
    return %c0_i32, %c0_i32_0 : i32, i32
  }
  func.func @transform_2(%arg0: i32) -> (i32, i32) {
    %c0_i32 = arith.constant 0 : i32
    %c0_i32_0 = arith.constant 0 : i32
    %c0_i32_1 = arith.constant 0 : i32
    return %c0_i32, %c0_i32_0 : i32, i32
  }
  func.func @transform_3(%arg0: i32) -> (i32, i32) {
    %c0_i32 = arith.constant 0 : i32
    %c0_i32_0 = arith.constant 0 : i32
    %c0_i32_1 = arith.constant 0 : i32
    return %c0_i32, %c0_i32_0 : i32, i32
  }
  func.func @transform_4(%arg0: i32) -> (i32, i32) {
    %c0_i32 = arith.constant 0 : i32
    %c0_i32_0 = arith.constant 0 : i32
    %c0_i32_1 = arith.constant 0 : i32
    return %c0_i32, %c0_i32_0 : i32, i32
  }
  func.func @transform_5(%arg0: i32) -> (i32, i32) {
    %c0_i32 = arith.constant 0 : i32
    %c0_i32_0 = arith.constant 0 : i32
    %c0_i32_1 = arith.constant 0 : i32
    return %c0_i32, %c0_i32_0 : i32, i32
  }
  func.func @transform_6(%arg0: i32) -> (i32, i32) {
    %c0_i32 = arith.constant 0 : i32
    %c0_i32_0 = arith.constant 0 : i32
    return %arg0, %c0_i32 : i32, i32
  }
}

module attributes {stable_mosaic.version = 11 : i64} {
  func.func @_recurrent_kernel(%arg0: i32, %arg1: i32, %arg2: memref<16x1024xf32, #tpu.memory_space<vmem>>, %arg3: memref<16x256xf32, #tpu.memory_space<vmem>>, %arg4: memref<16x256xf32, #tpu.memory_space<vmem>>, %arg5: memref<256x1024xbf16, #tpu.memory_space<vmem>>, %arg6: memref<256x128xbf16, #tpu.memory_space<vmem>>, %arg7: memref<256x128xbf16, #tpu.memory_space<vmem>>, %arg8: memref<1x128xf32, #tpu.memory_space<vmem>>, %arg9: memref<16x128xf32, #tpu.memory_space<vmem>>, %arg10: memref<16x256xf32, #tpu.memory_space<vmem>>, %arg11: memref<16x256xf32, #tpu.memory_space<vmem>>, %arg12: memref<2x16x256xf32, #tpu.memory_space<vmem>>, %arg13: memref<2x16x256xf32, #tpu.memory_space<vmem>>) attributes {dimension_semantics = [#tpu.dimension_semantics<parallel>, #tpu.dimension_semantics<arbitrary>], iteration_bounds = array<i64: 2, 1>, scalar_prefetch = 0 : i64, scratch_operands = 2 : i64, tpu.core_type = #tpu.core_type<tc>, window_params = [{transform_indices = @transform_0, window_bounds = array<i64: 16, 1024>}, {transform_indices = @transform_1, window_bounds = array<i64: 16, 256>}, {transform_indices = @transform_2, window_bounds = array<i64: 16, 256>}, {pipeline_mode = #tpu.pipeline_mode<synchronous>, transform_indices = @transform_3, window_bounds = array<i64: 256, 1024>}, {pipeline_mode = #tpu.pipeline_mode<synchronous>, transform_indices = @transform_4, window_bounds = array<i64: 256, 128>}, {pipeline_mode = #tpu.pipeline_mode<synchronous>, transform_indices = @transform_5, window_bounds = array<i64: 256, 128>}, {pipeline_mode = #tpu.pipeline_mode<synchronous>, transform_indices = @transform_6, window_bounds = array<i64: 1, 128>}, {transform_indices = @transform_7, window_bounds = array<i64: 16, 128>}, {transform_indices = @transform_8, window_bounds = array<i64: 16, 256>}, {transform_indices = @transform_9, window_bounds = array<i64: 16, 256>}]} {
    %c0_i32 = arith.constant 0 : i32
    %0 = arith.cmpi eq, %arg1, %c0_i32 : i32
    %1 = arith.extui %0 : i1 to i32
    %c0_i32_0 = arith.constant 0 : i32
    %2 = arith.cmpi ne, %1, %c0_i32_0 : i32
    scf.if %2 {
      %c0_27 = arith.constant 0 : index
      %c0_28 = arith.constant 0 : index
      %61 = vector.load %arg3[%c0_27, %c0_28] : memref<16x256xf32, #tpu.memory_space<vmem>>, vector<16x256xf32>
      %62 = arith.index_cast %arg0 : i32 to index
      %c0_29 = arith.constant 0 : index
      %c0_30 = arith.constant 0 : index
      %63 = vector.load %arg12[%62, %c0_29, %c0_30] : memref<2x16x256xf32, #tpu.memory_space<vmem>>, vector<1x16x256xf32>
      %64 = vector.shape_cast %63 : vector<1x16x256xf32> to vector<16x256xf32>
      %65 = vector.shape_cast %61 : vector<16x256xf32> to vector<1x16x256xf32>
      tpu.vector_store %arg12[%62, %c0_29, %c0_30], %65 {strides = array<i32>} : memref<2x16x256xf32, #tpu.memory_space<vmem>>, vector<1x16x256xf32>,
      %c0_31 = arith.constant 0 : index
      %c0_32 = arith.constant 0 : index
      %66 = vector.load %arg4[%c0_31, %c0_32] : memref<16x256xf32, #tpu.memory_space<vmem>>, vector<16x256xf32>
      %67 = arith.index_cast %arg0 : i32 to index
      %c0_33 = arith.constant 0 : index
      %c0_34 = arith.constant 0 : index
      %68 = vector.load %arg13[%67, %c0_33, %c0_34] : memref<2x16x256xf32, #tpu.memory_space<vmem>>, vector<1x16x256xf32>
      %69 = vector.shape_cast %68 : vector<1x16x256xf32> to vector<16x256xf32>
      %70 = vector.shape_cast %66 : vector<16x256xf32> to vector<1x16x256xf32>
      tpu.vector_store %arg13[%67, %c0_33, %c0_34], %70 {strides = array<i32>} : memref<2x16x256xf32, #tpu.memory_space<vmem>>, vector<1x16x256xf32>,
    } else {
    }
    %3 = arith.index_cast %arg0 : i32 to index
    %c0 = arith.constant 0 : index
    %c0_1 = arith.constant 0 : index
    %4 = vector.load %arg12[%3, %c0, %c0_1] : memref<2x16x256xf32, #tpu.memory_space<vmem>>, vector<1x16x256xf32>
    %5 = vector.shape_cast %4 : vector<1x16x256xf32> to vector<16x256xf32>
    %6 = arith.index_cast %arg0 : i32 to index
    %c0_2 = arith.constant 0 : index
    %c0_3 = arith.constant 0 : index
    %7 = vector.load %arg13[%6, %c0_2, %c0_3] : memref<2x16x256xf32, #tpu.memory_space<vmem>>, vector<1x16x256xf32>
    %8 = vector.shape_cast %7 : vector<1x16x256xf32> to vector<16x256xf32>
    %c0_4 = arith.constant 0 : index
    %c0_5 = arith.constant 0 : index
    %9 = vector.load %arg2[%c0_4, %c0_5] : memref<16x1024xf32, #tpu.memory_space<vmem>>, vector<16x1024xf32>
    %10 = arith.truncf %5 : vector<16x256xf32> to vector<16x256xbf16>
    %c0_6 = arith.constant 0 : index
    %c0_7 = arith.constant 0 : index
    %11 = vector.load %arg5[%c0_6, %c0_7] : memref<256x1024xbf16, #tpu.memory_space<vmem>>, vector<256x1024xbf16>
    %cst = arith.constant dense<0.000000e+00> : vector<16x1024xf32>
    %12 = tpu.matmul %10, %11, %cst {dimension_numbers = #tpu.dot_dimension_numbers<[1], [0], [0], [1], [0, 0, 1, 1], [], []>} : vector<16x256xbf16>, vector<256x1024xbf16>, vector<16x1024xf32> -> vector<16x1024xf32>
    %13 = arith.addf %9, %12 : vector<16x1024xf32>
    %14 = vector.extract_strided_slice %13 {offsets = [0, 256], sizes = [16, 256], strides = [1, 1]} : vector<16x1024xf32> to vector<16x256xf32>
    %15 = arith.negf %14 : vector<16x256xf32>
    %16 = math.exp %15 : vector<16x256xf32>
    %cst_8 = arith.constant 1.000000e+00 : f32
    %17 = vector.broadcast %cst_8 : f32 to vector<16x256xf32>
    %18 = arith.addf %17, %16 : vector<16x256xf32>
    %19 = arith.divf %17, %18 : vector<16x256xf32>
    %20 = arith.mulf %19, %8 : vector<16x256xf32>
    %21 = vector.extract_strided_slice %13 {offsets = [0, 0], sizes = [16, 256], strides = [1, 1]} : vector<16x1024xf32> to vector<16x256xf32>
    %22 = arith.negf %21 : vector<16x256xf32>
    %23 = math.exp %22 : vector<16x256xf32>
    %cst_9 = arith.constant 1.000000e+00 : f32
    %24 = vector.broadcast %cst_9 : f32 to vector<16x256xf32>
    %25 = arith.addf %24, %23 : vector<16x256xf32>
    %26 = arith.divf %24, %25 : vector<16x256xf32>
    %27 = vector.extract_strided_slice %13 {offsets = [0, 512], sizes = [16, 256], strides = [1, 1]} : vector<16x1024xf32> to vector<16x256xf32>
    %28 = math.tanh %27 : vector<16x256xf32>
    %29 = arith.mulf %26, %28 : vector<16x256xf32>
    %30 = arith.addf %20, %29 : vector<16x256xf32>
    %31 = vector.extract_strided_slice %13 {offsets = [0, 768], sizes = [16, 256], strides = [1, 1]} : vector<16x1024xf32> to vector<16x256xf32>
    %32 = arith.negf %31 : vector<16x256xf32>
    %33 = math.exp %32 : vector<16x256xf32>
    %cst_10 = arith.constant 1.000000e+00 : f32
    %34 = vector.broadcast %cst_10 : f32 to vector<16x256xf32>
    %35 = arith.addf %34, %33 : vector<16x256xf32>
    %36 = arith.divf %34, %35 : vector<16x256xf32>
    %37 = math.tanh %30 : vector<16x256xf32>
    %38 = arith.mulf %36, %37 : vector<16x256xf32>
    %39 = arith.index_cast %arg0 : i32 to index
    %c0_11 = arith.constant 0 : index
    %c0_12 = arith.constant 0 : index
    %40 = vector.load %arg12[%39, %c0_11, %c0_12] : memref<2x16x256xf32, #tpu.memory_space<vmem>>, vector<1x16x256xf32>
    %41 = vector.shape_cast %40 : vector<1x16x256xf32> to vector<16x256xf32>
    %42 = vector.shape_cast %38 : vector<16x256xf32> to vector<1x16x256xf32>
    tpu.vector_store %arg12[%39, %c0_11, %c0_12], %42 {strides = array<i32>} : memref<2x16x256xf32, #tpu.memory_space<vmem>>, vector<1x16x256xf32>,
    %43 = arith.index_cast %arg0 : i32 to index
    %c0_13 = arith.constant 0 : index
    %c0_14 = arith.constant 0 : index
    %44 = vector.load %arg13[%43, %c0_13, %c0_14] : memref<2x16x256xf32, #tpu.memory_space<vmem>>, vector<1x16x256xf32>
    %45 = vector.shape_cast %44 : vector<1x16x256xf32> to vector<16x256xf32>
    %46 = vector.shape_cast %30 : vector<16x256xf32> to vector<1x16x256xf32>
    tpu.vector_store %arg13[%43, %c0_13, %c0_14], %46 {strides = array<i32>} : memref<2x16x256xf32, #tpu.memory_space<vmem>>, vector<1x16x256xf32>,
    %47 = arith.truncf %38 : vector<16x256xf32> to vector<16x256xbf16>
    %c0_15 = arith.constant 0 : index
    %c0_16 = arith.constant 0 : index
    %48 = vector.load %arg6[%c0_15, %c0_16] : memref<256x128xbf16, #tpu.memory_space<vmem>>, vector<256x128xbf16>
    %cst_17 = arith.constant dense<0.000000e+00> : vector<16x128xf32>
    %49 = tpu.matmul %47, %48, %cst_17 {dimension_numbers = #tpu.dot_dimension_numbers<[1], [0], [0], [1], [0, 0, 1, 1], [], []>} : vector<16x256xbf16>, vector<256x128xbf16>, vector<16x128xf32> -> vector<16x128xf32>
    %50 = arith.truncf %30 : vector<16x256xf32> to vector<16x256xbf16>
    %c0_18 = arith.constant 0 : index
    %c0_19 = arith.constant 0 : index
    %51 = vector.load %arg7[%c0_18, %c0_19] : memref<256x128xbf16, #tpu.memory_space<vmem>>, vector<256x128xbf16>
    %cst_20 = arith.constant dense<0.000000e+00> : vector<16x128xf32>
    %52 = tpu.matmul %50, %51, %cst_20 {dimension_numbers = #tpu.dot_dimension_numbers<[1], [0], [0], [1], [0, 0, 1, 1], [], []>} : vector<16x256xbf16>, vector<256x128xbf16>, vector<16x128xf32> -> vector<16x128xf32>
    %53 = arith.addf %49, %52 : vector<16x128xf32>
    %c0_21 = arith.constant 0 : index
    %c0_22 = arith.constant 0 : index
    %54 = vector.load %arg8[%c0_21, %c0_22] : memref<1x128xf32, #tpu.memory_space<vmem>>, vector<1x128xf32>
    %55 = vector.broadcast %54 : vector<1x128xf32> to vector<16x128xf32>
    %56 = arith.addf %53, %55 : vector<16x128xf32>
    %c0_23 = arith.constant 0 : index
    %c0_24 = arith.constant 0 : index
    %57 = vector.load %arg9[%c0_23, %c0_24] : memref<16x128xf32, #tpu.memory_space<vmem>>, vector<16x128xf32>
    tpu.vector_store %arg9[%c0_23, %c0_24], %56 {strides = array<i32>} : memref<16x128xf32, #tpu.memory_space<vmem>>, vector<16x128xf32>,
    %c0_i32_25 = arith.constant 0 : i32
    %58 = arith.cmpi eq, %arg1, %c0_i32_25 : i32
    %59 = arith.extui %58 : i1 to i32
    %c0_i32_26 = arith.constant 0 : i32
    %60 = arith.cmpi ne, %59, %c0_i32_26 : i32
    scf.if %60 {
      %c0_27 = arith.constant 0 : index
      %c0_28 = arith.constant 0 : index
      %61 = vector.load %arg10[%c0_27, %c0_28] : memref<16x256xf32, #tpu.memory_space<vmem>>, vector<16x256xf32>
      tpu.vector_store %arg10[%c0_27, %c0_28], %38 {strides = array<i32>} : memref<16x256xf32, #tpu.memory_space<vmem>>, vector<16x256xf32>,
      %c0_29 = arith.constant 0 : index
      %c0_30 = arith.constant 0 : index
      %62 = vector.load %arg11[%c0_29, %c0_30] : memref<16x256xf32, #tpu.memory_space<vmem>>, vector<16x256xf32>
      tpu.vector_store %arg11[%c0_29, %c0_30], %30 {strides = array<i32>} : memref<16x256xf32, #tpu.memory_space<vmem>>, vector<16x256xf32>,
    } else {
    }
    return
  }
  func.func @transform_0(%arg0: i32, %arg1: i32) -> (i32, i32) {
    %c2_i32 = arith.constant 2 : i32
    %0 = arith.muli %arg1, %c2_i32 : i32
    %1 = arith.addi %0, %arg0 : i32
    %c0_i32 = arith.constant 0 : i32
    %c0_i32_0 = arith.constant 0 : i32
    return %1, %c0_i32 : i32, i32
  }
  func.func @transform_1(%arg0: i32, %arg1: i32) -> (i32, i32) {
    %c0_i32 = arith.constant 0 : i32
    %c0_i32_0 = arith.constant 0 : i32
    return %arg0, %c0_i32 : i32, i32
  }
  func.func @transform_2(%arg0: i32, %arg1: i32) -> (i32, i32) {
    %c0_i32 = arith.constant 0 : i32
    %c0_i32_0 = arith.constant 0 : i32
    return %arg0, %c0_i32 : i32, i32
  }
  func.func @transform_3(%arg0: i32, %arg1: i32) -> (i32, i32) {
    %c0_i32 = arith.constant 0 : i32
    %c0_i32_0 = arith.constant 0 : i32
    %c0_i32_1 = arith.constant 0 : i32
    return %c0_i32, %c0_i32_0 : i32, i32
  }
  func.func @transform_4(%arg0: i32, %arg1: i32) -> (i32, i32) {
    %c0_i32 = arith.constant 0 : i32
    %c0_i32_0 = arith.constant 0 : i32
    %c0_i32_1 = arith.constant 0 : i32
    return %c0_i32, %c0_i32_0 : i32, i32
  }
  func.func @transform_5(%arg0: i32, %arg1: i32) -> (i32, i32) {
    %c0_i32 = arith.constant 0 : i32
    %c0_i32_0 = arith.constant 0 : i32
    %c0_i32_1 = arith.constant 0 : i32
    return %c0_i32, %c0_i32_0 : i32, i32
  }
  func.func @transform_6(%arg0: i32, %arg1: i32) -> (i32, i32) {
    %c0_i32 = arith.constant 0 : i32
    %c0_i32_0 = arith.constant 0 : i32
    %c0_i32_1 = arith.constant 0 : i32
    return %c0_i32, %c0_i32_0 : i32, i32
  }
  func.func @transform_7(%arg0: i32, %arg1: i32) -> (i32, i32) {
    %c2_i32 = arith.constant 2 : i32
    %0 = arith.muli %arg1, %c2_i32 : i32
    %1 = arith.addi %0, %arg0 : i32
    %c0_i32 = arith.constant 0 : i32
    %c0_i32_0 = arith.constant 0 : i32
    return %1, %c0_i32 : i32, i32
  }
  func.func @transform_8(%arg0: i32, %arg1: i32) -> (i32, i32) {
    %c0_i32 = arith.constant 0 : i32
    %c0_i32_0 = arith.constant 0 : i32
    return %arg0, %c0_i32 : i32, i32
  }
  func.func @transform_9(%arg0: i32, %arg1: i32) -> (i32, i32) {
    %c0_i32 = arith.constant 0 : i32
    %c0_i32_0 = arith.constant 0 : i32
    return %arg0, %c0_i32 : i32, i32
  }
}

</mosaic_0001>

<llo_original>
// kernel: reduction_actor_critic_forward.2
$region0: #{reduction_actor_critic_forward.2}
  #allocation0 [shape = 'u32[]', space=smem, size = 0x4, offset = 0x4, fixed_abs, tag = 'smem constant byte address 0x4 - core index']
  #allocation1 [shape = 'u32[144,128]{1,0:T(1,128)}', space=vmem, size = 0x12000, scoped, tag = 'internal scratch']
  %s0 = inlined_call_operand.vmem [shape: f32[32,16], index: 0, kind: input, shape index: {}]
  %s1 = inlined_call_operand.vmem [shape: bf16[16,128], index: 1, kind: input, shape index: {}]
  %s2 = inlined_call_operand.hbm [shape: bf16[128,128], index: 2, kind: input, shape index: {}]
  %s3 = inlined_call_operand.hbm [shape: bf16[128,1024], index: 3, kind: input, shape index: {}]
  %s4 = inlined_call_operand.vmem [shape: f32[2,128], index: 4, kind: input, shape index: {}]
  %s5 = inlined_call_operand.vmem [shape: f32[1,1024], index: 5, kind: input, shape index: {}]
  %s6 = inlined_call_operand.vmem [shape: f32[32,1024], index: 6, kind: output, shape index: {}]
  %s7 = sld [smem:[#allocation0]]
  $region42: #{reduction_actor_critic_forward.2} parent=0
    _
  %s9 = ssub.s32 1, %s7
  %s10 = scalar_select 0, %s9, %s7
  $region1: #{reduction_actor_critic_forward.2} parent=0
    #allocation2 [shape = 'u8[32768]{0}', space=vmem, size = 0x8000, scoped, tag = 'input window, operand 2, single buffered']
    #allocation3 [shape = 's32[1]{0}', space=sflag, size = 0x4, scoped, tag = 'scoped memory for reduction_actor_critic_forward.2']
    #allocation4 [shape = 'u8[262144]{0}', space=vmem, size = 0x40000, scoped, tag = 'input window, operand 3, single buffered']
    #allocation5 [shape = 's32[1]{0}', space=sflag, size = 0x4, scoped, tag = 'scoped memory for reduction_actor_critic_forward.2']
    %11 = vsyncpa [#allocation3], 0
    %12 = vsyncpa [#allocation5], 0
    // Predicated region
    $region2: #{reduction_actor_critic_forward.2} parent=1 // pred_check
      _
    $region3: #{reduction_actor_critic_forward.2} parent=1 // pred_check_branch
      %14 = sbr.rel (0) target = $region5
    $region4: #{reduction_actor_critic_forward.2} parent=1 // pred_region
      _
    $region5: #{reduction_actor_critic_forward.2} parent=1 // pred_fallthru
      _
    // Predicated region
    $region6: #{reduction_actor_critic_forward.2} parent=1 // pred_check
      _
    $region7: #{reduction_actor_critic_forward.2} parent=1 // pred_check_branch
      %16 = sbr.rel (0) target = $region9
    $region8: #{reduction_actor_critic_forward.2} parent=1 // pred_region
      _
    $region9: #{reduction_actor_critic_forward.2} parent=1 // pred_fallthru
      _
    // Predicated region
    $region10: #{reduction_actor_critic_forward.2} parent=1 // pred_check
      _
    $region11: #{reduction_actor_critic_forward.2} parent=1 // pred_check_branch
      %18 = sbr.rel (0) target = $region13
    $region12: #{reduction_actor_critic_forward.2} parent=1 // pred_region
      %s20 = ssub.s32 1024, 1024
      %21 = vsyncadd [#allocation3], %s20
      %s22 = sshll.u32 [#allocation2], 4
      %s23 = int_to_ptr.vmem [resolvable:$true] %s22
      %28 = dma.hbm_to_vmem [thread:$0]  %s2, 1024, %s23, [#allocation3], 64, 64, 4
    $region13: #{reduction_actor_critic_forward.2} parent=1 // pred_fallthru
      _
    // Predicated region
    $region14: #{reduction_actor_critic_forward.2} parent=1 // pred_check
      _
    $region15: #{reduction_actor_critic_forward.2} parent=1 // pred_check_branch
      %30 = sbr.rel (0) target = $region17
    $region16: #{reduction_actor_critic_forward.2} parent=1 // pred_region
      %s32 = ssub.s32 8192, 8192
      %33 = vsyncadd [#allocation5], %s32
      %s34 = sshll.u32 [#allocation4], 4
      %s35 = int_to_ptr.vmem [resolvable:$true] %s34
      %40 = dma.hbm_to_vmem [thread:$0]  %s3, 8192, %s35, [#allocation5], 512, 512, 32
    $region17: #{reduction_actor_critic_forward.2} parent=1 // pred_fallthru
      _
    // Predicated region
    $region18: #{reduction_actor_critic_forward.2} parent=1 // pred_check
      _
    $region19: #{reduction_actor_critic_forward.2} parent=1 // pred_check_branch
      %42 = sbr.rel (0) target = $region21
    $region20: #{reduction_actor_critic_forward.2} parent=1 // pred_region
      _
    $region21: #{reduction_actor_critic_forward.2} parent=1 // pred_fallthru
      _
    // Predicated region
    $region22: #{reduction_actor_critic_forward.2} parent=1 // pred_check
      _
    $region23: #{reduction_actor_critic_forward.2} parent=1 // pred_check_branch
      %44 = sbr.rel (0) target = $region25
    $region24: #{reduction_actor_critic_forward.2} parent=1 // pred_region
      _
    $region25: #{reduction_actor_critic_forward.2} parent=1 // pred_fallthru
      _
    // Predicated region
    $region26: #{reduction_actor_critic_forward.2} parent=1 // pred_check
      _
    $region27: #{reduction_actor_critic_forward.2} parent=1 // pred_check_branch
      %46 = sbr.rel (0) target = $region29
    $region28: #{reduction_actor_critic_forward.2} parent=1 // pred_region
      %47 = dma.done [#allocation3], 1024
    $region29: #{reduction_actor_critic_forward.2} parent=1 // pred_fallthru
      _
    // Predicated region
    $region30: #{reduction_actor_critic_forward.2} parent=1 // pred_check
      _
    $region31: #{reduction_actor_critic_forward.2} parent=1 // pred_check_branch
      %49 = sbr.rel (0) target = $region33
    $region32: #{reduction_actor_critic_forward.2} parent=1 // pred_region
      %50 = dma.done [#allocation5], 8192
    $region33: #{reduction_actor_critic_forward.2} parent=1 // pred_fallthru
      _
    %v52 = vld [vmem:[%s0] sm:$0xff]
    %v53 = vld [vmem:[%s0 + $0x8] sm:$0xff]
    %v54 = vld [vmem:[%s0 + $0x10] sm:$0xff]
    %v55 = vld [vmem:[%s0 + $0x18] sm:$0xff]
    %v56 = vpack.c.bf16 %v53, %v52
    %v57 = vpack.c.bf16 %v55, %v54
    %v58 = vld [vmem:[%s1] sm:$0xf]
    %v59 = vld [vmem:[%s1 + $0x4] sm:$0xf]
    %v60 = vld [vmem:[%s4] sm:$0x1]
    %v61 = vlaneseq
    %v62 = vshrl.u32 %v61, 7
    %v63 = vsub.s32 0, %v62
    %v64 = vrot.slane %v60, %v63
    %v67 = vunpack.c.l.b16 %v58
    %v68 = vunpack.c.l.b16 %v59
    %v69 = vpack.c.b16 %v68, %v67
    %vm71 = vcmask 130048
    %v73 = vsel %vm71, %v56, 0
    %v76 = vsel %vm71, %v57, 0
    %78 = vmatprep.subr.bf16.mxu0 0
    %79 = vmatpush1.bf16.msra.mxu0 0
    %80 = vmatprep.subr.bf16.mxu0 0
    %81 = vmatpush1.bf16.msra.mxu0 0
    %82 = vmatprep.subr.bf16.mxu0 0
    %83 = vmatpush1.bf16.msra.mxu0 0
    %84 = vmatprep.subr.bf16.mxu0 0
    %85 = vmatpush1.bf16.msra.mxu0 0
    %86 = vmatprep.subr.bf16.mxu0 0
    %87 = vmatpush1.bf16.msra.mxu0 0
    %88 = vmatprep.subr.bf16.mxu0 0
    %89 = vmatpush1.bf16.msra.mxu0 0
    %90 = vmatprep.subr.bf16.mxu0 0
    %91 = vmatpush1.bf16.msra.mxu0 0
    %92 = vmatprep.subr.bf16.mxu0 0
    %93 = vmatpush1.bf16.msra.mxu0 %v69
    %94 = vmatprep.subr.bf16.mxu0 0
    %95 = vmatpush2.bf16.msra.mxu0 0
    %96 = vmatprep.subr.bf16.mxu0 0
    %97 = vmatpush2.bf16.msra.mxu0 0
    %98 = vmatprep.subr.bf16.mxu0 0
    %99 = vmatpush2.bf16.msra.mxu0 0
    %100 = vmatprep.subr.bf16.mxu0 0
    %101 = vmatpush2.bf16.msra.mxu0 0
    %102 = vmatprep.subr.bf16.mxu0 0
    %103 = vmatpush2.bf16.msra.mxu0 0
    %104 = vmatprep.subr.bf16.mxu0 0
    %105 = vmatpush2.bf16.msra.mxu0 0
    %106 = vmatprep.subr.bf16.mxu0 0
    %107 = vmatpush2.bf16.msra.mxu0 0
    %108 = vmatprep.subr.bf16.mxu0 0
    %109 = vmatpush2.bf16.msra.mxu0 0
    %110 = vmatprep.mubr.bf16.mxu0 0
    %111 = vmatmul.mubr.bf16.gmra.mxu0 %v73
    %v112 = vpop.f32.mrf.mxu0
    %v113 = vadd.f32 %v64, %v112
    %v114 = vpop.f32.mrf.mxu0
    %v115 = vpop.f32.mrf.mxu0
    %v116 = vadd.f32 %v64, %v115
    %v117 = vpop.f32.mrf.mxu0
    %118 = vmatprep.mubr.bf16.mxu0 0
    %119 = vmatmul.mubr.bf16.gmra.mxu0 %v76
    %v120 = vpop.f32.mrf.mxu0
    %v121 = vadd.f32 %v64, %v120
    %v122 = vpop.f32.mrf.mxu0
    %v123 = vpop.f32.mrf.mxu0
    %v124 = vadd.f32 %v64, %v123
    %v125 = vpop.f32.mrf.mxu0
    %126 = vdwg.mxu0
    %v127 = vmax.f32 %v113, 0.0
    %v128 = vmax.f32 %v116, 0.0
    %v129 = vmax.f32 %v121, 0.0
    %v130 = vmax.f32 %v124, 0.0
    %v131 = vpack.c.bf16 %v128, %v127
    %v132 = vpack.c.bf16 %v130, %v129
    %v133 = vld [vmem:[#allocation2] sm:$0xf]
    %v134 = vld [vmem:[#allocation2 + $0x4] sm:$0xf]
    %v135 = vld [vmem:[#allocation2 + $0x8] sm:$0xf]
    %v136 = vld [vmem:[#allocation2 + $0xc] sm:$0xf]
    %v137 = vld [vmem:[#allocation2 + $0x10] sm:$0xf]
    %v138 = vld [vmem:[#allocation2 + $0x14] sm:$0xf]
    %v139 = vld [vmem:[#allocation2 + $0x18] sm:$0xf]
    %v140 = vld [vmem:[#allocation2 + $0x1c] sm:$0xf]
    %v141 = vld [vmem:[#allocation2 + $0x20] sm:$0xf]
    %v142 = vld [vmem:[#allocation2 + $0x24] sm:$0xf]
    %v143 = vld [vmem:[#allocation2 + $0x28] sm:$0xf]
    %v144 = vld [vmem:[#allocation2 + $0x2c] sm:$0xf]
    %v145 = vld [vmem:[#allocation2 + $0x30] sm:$0xf]
    %v146 = vld [vmem:[#allocation2 + $0x34] sm:$0xf]
    %v147 = vld [vmem:[#allocation2 + $0x38] sm:$0xf]
    %v148 = vld [vmem:[#allocation2 + $0x3c] sm:$0xf]
    %v149 = vld [vmem:[%s4 + $0x1] sm:$0x1]
    %v150 = vlaneseq
    %v151 = vshrl.u32 %v150, 7
    %v152 = vsub.s32 0, %v151
    %v153 = vrot.slane %v149, %v152
    %v170 = vunpack.c.l.b16 %v133
    %v171 = vunpack.c.l.b16 %v134
    %v172 = vunpack.c.l.b16 %v135
    %v173 = vunpack.c.l.b16 %v136
    %v174 = vunpack.c.l.b16 %v137
    %v175 = vunpack.c.l.b16 %v138
    %v176 = vunpack.c.l.b16 %v139
    %v177 = vunpack.c.l.b16 %v140
    %v178 = vunpack.c.l.b16 %v141
    %v179 = vunpack.c.l.b16 %v142
    %v180 = vunpack.c.l.b16 %v143
    %v181 = vunpack.c.l.b16 %v144
    %v182 = vunpack.c.l.b16 %v145
    %v183 = vunpack.c.l.b16 %v146
    %v184 = vunpack.c.l.b16 %v147
    %v185 = vunpack.c.l.b16 %v148
    %v186 = vpack.c.b16 %v171, %v170
    %v187 = vpack.c.b16 %v173, %v172
    %v188 = vpack.c.b16 %v175, %v174
    %v189 = vpack.c.b16 %v177, %v176
    %v190 = vpack.c.b16 %v179, %v178
    %v191 = vpack.c.b16 %v181, %v180
    %v192 = vpack.c.b16 %v183, %v182
    %v193 = vpack.c.b16 %v185, %v184
    %202 = vmatprep.subr.bf16.mxu0 0
    %203 = vmatpush1.bf16.msra.mxu0 %v193
    %204 = vmatprep.subr.bf16.mxu0 0
    %205 = vmatpush1.bf16.msra.mxu0 %v192
    %206 = vmatprep.subr.bf16.mxu0 0
    %207 = vmatpush1.bf16.msra.mxu0 %v191
    %208 = vmatprep.subr.bf16.mxu0 0
    %209 = vmatpush1.bf16.msra.mxu0 %v190
    %210 = vmatprep.subr.bf16.mxu0 0
    %211 = vmatpush1.bf16.msra.mxu0 %v189
    %212 = vmatprep.subr.bf16.mxu0 0
    %213 = vmatpush1.bf16.msra.mxu0 %v188
    %214 = vmatprep.subr.bf16.mxu0 0
    %215 = vmatpush1.bf16.msra.mxu0 %v187
    %216 = vmatprep.subr.bf16.mxu0 0
    %217 = vmatpush1.bf16.msra.mxu0 %v186
    %218 = vmatprep.subr.bf16.mxu0 0
    %219 = vmatpush2.bf16.msra.mxu0 0
    %220 = vmatprep.subr.bf16.mxu0 0
    %221 = vmatpush2.bf16.msra.mxu0 0
    %222 = vmatprep.subr.bf16.mxu0 0
    %223 = vmatpush2.bf16.msra.mxu0 0
    %224 = vmatprep.subr.bf16.mxu0 0
    %225 = vmatpush2.bf16.msra.mxu0 0
    %226 = vmatprep.subr.bf16.mxu0 0
    %227 = vmatpush2.bf16.msra.mxu0 0
    %228 = vmatprep.subr.bf16.mxu0 0
    %229 = vmatpush2.bf16.msra.mxu0 0
    %230 = vmatprep.subr.bf16.mxu0 0
    %231 = vmatpush2.bf16.msra.mxu0 0
    %232 = vmatprep.subr.bf16.mxu0 0
    %233 = vmatpush2.bf16.msra.mxu0 0
    %234 = vmatprep.mubr.bf16.mxu0 0
    %235 = vmatmul.mubr.bf16.gmra.mxu0 %v131
    %v236 = vpop.f32.mrf.mxu0
    %v237 = vadd.f32 %v153, %v236
    %v238 = vpop.f32.mrf.mxu0
    %v239 = vpop.f32.mrf.mxu0
    %v240 = vadd.f32 %v153, %v239
    %v241 = vpop.f32.mrf.mxu0
    %242 = vmatprep.mubr.bf16.mxu0 0
    %243 = vmatmul.mubr.bf16.gmra.mxu0 %v132
    %v244 = vpop.f32.mrf.mxu0
    %v245 = vadd.f32 %v153, %v244
    %v246 = vpop.f32.mrf.mxu0
    %v247 = vpop.f32.mrf.mxu0
    %v248 = vadd.f32 %v153, %v247
    %v249 = vpop.f32.mrf.mxu0
    %250 = vdwg.mxu0
    %v251 = vmax.f32 %v237, 0.0
    %v252 = vmax.f32 %v240, 0.0
    %v253 = vmax.f32 %v245, 0.0
    %v254 = vmax.f32 %v248, 0.0
    %v255 = vpack.c.bf16 %v252, %v251
    %v256 = vpack.c.bf16 %v254, %v253
    %v257 = vld [vmem:[#allocation4] sm:$0xff]
    %v258 = vld [vmem:[#allocation4 + $0x8] sm:$0xff]
    %v259 = vld [vmem:[#allocation4 + $0x10] sm:$0xff]
    %v260 = vld [vmem:[#allocation4 + $0x18] sm:$0xff]
    %v261 = vld [vmem:[#allocation4 + $0x20] sm:$0xff]
    %v262 = vld [vmem:[#allocation4 + $0x28] sm:$0xff]
    %v263 = vld [vmem:[#allocation4 + $0x30] sm:$0xff]
    %v264 = vld [vmem:[#allocation4 + $0x38] sm:$0xff]
    %v265 = vld [vmem:[#allocation4 + $0x40] sm:$0xff]
    %v266 = vld [vmem:[#allocation4 + $0x48] sm:$0xff]
    %v267 = vld [vmem:[#allocation4 + $0x50] sm:$0xff]
    %v268 = vld [vmem:[#allocation4 + $0x58] sm:$0xff]
    %v269 = vld [vmem:[#allocation4 + $0x60] sm:$0xff]
    %v270 = vld [vmem:[#allocation4 + $0x68] sm:$0xff]
    %v271 = vld [vmem:[#allocation4 + $0x70] sm:$0xff]
    %v272 = vld [vmem:[#allocation4 + $0x78] sm:$0xff]
    %v273 = vld [vmem:[#allocation4 + $0x80] sm:$0xff]
    %v274 = vld [vmem:[#allocation4 + $0x88] sm:$0xff]
    %v275 = vld [vmem:[#allocation4 + $0x90] sm:$0xff]
    %v276 = vld [vmem:[#allocation4 + $0x98] sm:$0xff]
    %v277 = vld [vmem:[#allocation4 + $0xa0] sm:$0xff]
    %v278 = vld [vmem:[#allocation4 + $0xa8] sm:$0xff]
    %v279 = vld [vmem:[#allocation4 + $0xb0] sm:$0xff]
    %v280 = vld [vmem:[#allocation4 + $0xb8] sm:$0xff]
    %v281 = vld [vmem:[#allocation4 + $0xc0] sm:$0xff]
    %v282 = vld [vmem:[#allocation4 + $0xc8] sm:$0xff]
    %v283 = vld [vmem:[#allocation4 + $0xd0] sm:$0xff]
    %v284 = vld [vmem:[#allocation4 + $0xd8] sm:$0xff]
    %v285 = vld [vmem:[#allocation4 + $0xe0] sm:$0xff]
    %v286 = vld [vmem:[#allocation4 + $0xe8] sm:$0xff]
    %v287 = vld [vmem:[#allocation4 + $0xf0] sm:$0xff]
    %v288 = vld [vmem:[#allocation4 + $0xf8] sm:$0xff]
    %v289 = vld [vmem:[#allocation4 + $0x100] sm:$0xff]
    %v290 = vld [vmem:[#allocation4 + $0x108] sm:$0xff]
    %v291 = vld [vmem:[#allocation4 + $0x110] sm:$0xff]
    %v292 = vld [vmem:[#allocation4 + $0x118] sm:$0xff]
    %v293 = vld [vmem:[#allocation4 + $0x120] sm:$0xff]
    %v294 = vld [vmem:[#allocation4 + $0x128] sm:$0xff]
    %v295 = vld [vmem:[#allocation4 + $0x130] sm:$0xff]
    %v296 = vld [vmem:[#allocation4 + $0x138] sm:$0xff]
    %v297 = vld [vmem:[#allocation4 + $0x140] sm:$0xff]
    %v298 = vld [vmem:[#allocation4 + $0x148] sm:$0xff]
    %v299 = vld [vmem:[#allocation4 + $0x150] sm:$0xff]
    %v300 = vld [vmem:[#allocation4 + $0x158] sm:$0xff]
    %v301 = vld [vmem:[#allocation4 + $0x160] sm:$0xff]
    %v302 = vld [vmem:[#allocation4 + $0x168] sm:$0xff]
    %v303 = vld [vmem:[#allocation4 + $0x170] sm:$0xff]
    %v304 = vld [vmem:[#allocation4 + $0x178] sm:$0xff]
    %v305 = vld [vmem:[#allocation4 + $0x180] sm:$0xff]
    %v306 = vld [vmem:[#allocation4 + $0x188] sm:$0xff]
    %v307 = vld [vmem:[#allocation4 + $0x190] sm:$0xff]
    %v308 = vld [vmem:[#allocation4 + $0x198] sm:$0xff]
    %v309 = vld [vmem:[#allocation4 + $0x1a0] sm:$0xff]
    %v310 = vld [vmem:[#allocation4 + $0x1a8] sm:$0xff]
    %v311 = vld [vmem:[#allocation4 + $0x1b0] sm:$0xff]
    %v312 = vld [vmem:[#allocation4 + $0x1b8] sm:$0xff]
    %v313 = vld [vmem:[#allocation4 + $0x1c0] sm:$0xff]
    %v314 = vld [vmem:[#allocation4 + $0x1c8] sm:$0xff]
    %v315 = vld [vmem:[#allocation4 + $0x1d0] sm:$0xff]
    %v316 = vld [vmem:[#allocation4 + $0x1d8] sm:$0xff]
    %v317 = vld [vmem:[#allocation4 + $0x1e0] sm:$0xff]
    %v318 = vld [vmem:[#allocation4 + $0x1e8] sm:$0xff]
    %v319 = vld [vmem:[#allocation4 + $0x1f0] sm:$0xff]
    %v320 = vld [vmem:[#allocation4 + $0x1f8] sm:$0xff]
    %v321 = vld [vmem:[%s5] sm:$0xff]
    %v323 = vlaneseq
    %v324 = vshrl.u32 %v323, 7
    %v325 = vsub.s32 0, %v324
    %v326 = vrot.slane %v321, %v325
    %v327 = vlaneseq
    %v328 = vshrl.u32 %v327, 7
    %v329 = vsub.s32 1, %v328
    %v330 = vrot.slane %v321, %v329
    %v331 = vlaneseq
    %v332 = vshrl.u32 %v331, 7
    %v333 = vsub.s32 2, %v332
    %v334 = vrot.slane %v321, %v333
    %v335 = vlaneseq
    %v336 = vshrl.u32 %v335, 7
    %v337 = vsub.s32 3, %v336
    %v338 = vrot.slane %v321, %v337
    %v339 = vlaneseq
    %v340 = vshrl.u32 %v339, 7
    %v341 = vsub.s32 4, %v340
    %v342 = vrot.slane %v321, %v341
    %v343 = vlaneseq
    %v344 = vshrl.u32 %v343, 7
    %v345 = vsub.s32 5, %v344
    %v346 = vrot.slane %v321, %v345
    %v347 = vlaneseq
    %v348 = vshrl.u32 %v347, 7
    %v349 = vsub.s32 6, %v348
    %v350 = vrot.slane %v321, %v349
    %v351 = vlaneseq
    %v352 = vshrl.u32 %v351, 7
    %v353 = vsub.s32 7, %v352
    %v354 = vrot.slane %v321, %v353
    %v427 = vunpack.c.l.b16 %v257
    %v428 = vunpack.c.h.b16 %v257
    %v429 = vunpack.c.l.b16 %v258
    %v430 = vunpack.c.h.b16 %v258
    %v431 = vunpack.c.l.b16 %v259
    %v432 = vunpack.c.h.b16 %v259
    %v433 = vunpack.c.l.b16 %v260
    %v434 = vunpack.c.h.b16 %v260
    %v435 = vunpack.c.l.b16 %v261
    %v436 = vunpack.c.h.b16 %v261
    %v437 = vunpack.c.l.b16 %v262
    %v438 = vunpack.c.h.b16 %v262
    %v439 = vunpack.c.l.b16 %v263
    %v440 = vunpack.c.h.b16 %v263
    %v441 = vunpack.c.l.b16 %v264
    %v442 = vunpack.c.h.b16 %v264
    %v443 = vunpack.c.l.b16 %v265
    %v444 = vunpack.c.h.b16 %v265
    %v445 = vunpack.c.l.b16 %v266
    %v446 = vunpack.c.h.b16 %v266
    %v447 = vunpack.c.l.b16 %v267
    %v448 = vunpack.c.h.b16 %v267
    %v449 = vunpack.c.l.b16 %v268
    %v450 = vunpack.c.h.b16 %v268
    %v451 = vunpack.c.l.b16 %v269
    %v452 = vunpack.c.h.b16 %v269
    %v453 = vunpack.c.l.b16 %v270
    %v454 = vunpack.c.h.b16 %v270
    %v455 = vunpack.c.l.b16 %v271
    %v456 = vunpack.c.h.b16 %v271
    %v457 = vunpack.c.l.b16 %v272
    %v458 = vunpack.c.h.b16 %v272
    %v459 = vunpack.c.l.b16 %v273
    %v460 = vunpack.c.h.b16 %v273
    %v461 = vunpack.c.l.b16 %v274
    %v462 = vunpack.c.h.b16 %v274
    %v463 = vunpack.c.l.b16 %v275
    %v464 = vunpack.c.h.b16 %v275
    %v465 = vunpack.c.l.b16 %v276
    %v466 = vunpack.c.h.b16 %v276
    %v467 = vunpack.c.l.b16 %v277
    %v468 = vunpack.c.h.b16 %v277
    %v469 = vunpack.c.l.b16 %v278
    %v470 = vunpack.c.h.b16 %v278
    %v471 = vunpack.c.l.b16 %v279
    %v472 = vunpack.c.h.b16 %v279
    %v473 = vunpack.c.l.b16 %v280
    %v474 = vunpack.c.h.b16 %v280
    %v475 = vunpack.c.l.b16 %v281
    %v476 = vunpack.c.h.b16 %v281
    %v477 = vunpack.c.l.b16 %v282
    %v478 = vunpack.c.h.b16 %v282
    %v479 = vunpack.c.l.b16 %v283
    %v480 = vunpack.c.h.b16 %v283
    %v481 = vunpack.c.l.b16 %v284
    %v482 = vunpack.c.h.b16 %v284
    %v483 = vunpack.c.l.b16 %v285
    %v484 = vunpack.c.h.b16 %v285
    %v485 = vunpack.c.l.b16 %v286
    %v486 = vunpack.c.h.b16 %v286
    %v487 = vunpack.c.l.b16 %v287
    %v488 = vunpack.c.h.b16 %v287
    %v489 = vunpack.c.l.b16 %v288
    %v490 = vunpack.c.h.b16 %v288
    %v491 = vunpack.c.l.b16 %v289
    %v492 = vunpack.c.h.b16 %v289
    %v493 = vunpack.c.l.b16 %v290
    %v494 = vunpack.c.h.b16 %v290
    %v495 = vunpack.c.l.b16 %v291
    %v496 = vunpack.c.h.b16 %v291
    %v497 = vunpack.c.l.b16 %v292
    %v498 = vunpack.c.h.b16 %v292
    %v499 = vunpack.c.l.b16 %v293
    %v500 = vunpack.c.h.b16 %v293
    %v501 = vunpack.c.l.b16 %v294
    %v502 = vunpack.c.h.b16 %v294
    %v503 = vunpack.c.l.b16 %v295
    %v504 = vunpack.c.h.b16 %v295
    %v505 = vunpack.c.l.b16 %v296
    %v506 = vunpack.c.h.b16 %v296
    %v507 = vunpack.c.l.b16 %v297
    %v508 = vunpack.c.h.b16 %v297
    %v509 = vunpack.c.l.b16 %v298
    %v510 = vunpack.c.h.b16 %v298
    %v511 = vunpack.c.l.b16 %v299
    %v512 = vunpack.c.h.b16 %v299
    %v513 = vunpack.c.l.b16 %v300
    %v514 = vunpack.c.h.b16 %v300
    %v515 = vunpack.c.l.b16 %v301
    %v516 = vunpack.c.h.b16 %v301
    %v517 = vunpack.c.l.b16 %v302
    %v518 = vunpack.c.h.b16 %v302
    %v519 = vunpack.c.l.b16 %v303
    %v520 = vunpack.c.h.b16 %v303
    %v521 = vunpack.c.l.b16 %v304
    %v522 = vunpack.c.h.b16 %v304
    %v523 = vunpack.c.l.b16 %v305
    %v524 = vunpack.c.h.b16 %v305
    %v525 = vunpack.c.l.b16 %v306
    %v526 = vunpack.c.h.b16 %v306
    %v527 = vunpack.c.l.b16 %v307
    %v528 = vunpack.c.h.b16 %v307
    %v529 = vunpack.c.l.b16 %v308
    %v530 = vunpack.c.h.b16 %v308
    %v531 = vunpack.c.l.b16 %v309
    %v532 = vunpack.c.h.b16 %v309
    %v533 = vunpack.c.l.b16 %v310
    %v534 = vunpack.c.h.b16 %v310
    %v535 = vunpack.c.l.b16 %v311
    %v536 = vunpack.c.h.b16 %v311
    %v537 = vunpack.c.l.b16 %v312
    %v538 = vunpack.c.h.b16 %v312
    %v539 = vunpack.c.l.b16 %v313
    %v540 = vunpack.c.h.b16 %v313
    %v541 = vunpack.c.l.b16 %v314
    %v542 = vunpack.c.h.b16 %v314
    %v543 = vunpack.c.l.b16 %v315
    %v544 = vunpack.c.h.b16 %v315
    %v545 = vunpack.c.l.b16 %v316
    %v546 = vunpack.c.h.b16 %v316
    %v547 = vunpack.c.l.b16 %v317
    %v548 = vunpack.c.h.b16 %v317
    %v549 = vunpack.c.l.b16 %v318
    %v550 = vunpack.c.h.b16 %v318
    %v551 = vunpack.c.l.b16 %v319
    %v552 = vunpack.c.h.b16 %v319
    %v553 = vunpack.c.l.b16 %v320
    %v554 = vunpack.c.h.b16 %v320
    %v555 = vpack.c.b16 %v435, %v427
    %v556 = vpack.c.b16 %v436, %v428
    %v557 = vpack.c.b16 %v437, %v429
    %v558 = vpack.c.b16 %v438, %v430
    %v559 = vpack.c.b16 %v439, %v431
    %v560 = vpack.c.b16 %v440, %v432
    %v561 = vpack.c.b16 %v441, %v433
    %v562 = vpack.c.b16 %v442, %v434
    %v563 = vpack.c.b16 %v451, %v443
    %v564 = vpack.c.b16 %v452, %v444
    %v565 = vpack.c.b16 %v453, %v445
    %v566 = vpack.c.b16 %v454, %v446
    %v567 = vpack.c.b16 %v455, %v447
    %v568 = vpack.c.b16 %v456, %v448
    %v569 = vpack.c.b16 %v457, %v449
    %v570 = vpack.c.b16 %v458, %v450
    %v571 = vpack.c.b16 %v467, %v459
    %v572 = vpack.c.b16 %v468, %v460
    %v573 = vpack.c.b16 %v469, %v461
    %v574 = vpack.c.b16 %v470, %v462
    %v575 = vpack.c.b16 %v471, %v463
    %v576 = vpack.c.b16 %v472, %v464
    %v577 = vpack.c.b16 %v473, %v465
    %v578 = vpack.c.b16 %v474, %v466
    %v579 = vpack.c.b16 %v483, %v475
    %v580 = vpack.c.b16 %v484, %v476
    %v581 = vpack.c.b16 %v485, %v477
    %v582 = vpack.c.b16 %v486, %v478
    %v583 = vpack.c.b16 %v487, %v479
    %v584 = vpack.c.b16 %v488, %v480
    %v585 = vpack.c.b16 %v489, %v481
    %v586 = vpack.c.b16 %v490, %v482
    %v587 = vpack.c.b16 %v499, %v491
    %v588 = vpack.c.b16 %v500, %v492
    %v589 = vpack.c.b16 %v501, %v493
    %v590 = vpack.c.b16 %v502, %v494
    %v591 = vpack.c.b16 %v503, %v495
    %v592 = vpack.c.b16 %v504, %v496
    %v593 = vpack.c.b16 %v505, %v497
    %v594 = vpack.c.b16 %v506, %v498
    %v595 = vpack.c.b16 %v515, %v507
    %v596 = vpack.c.b16 %v516, %v508
    %v597 = vpack.c.b16 %v517, %v509
    %v598 = vpack.c.b16 %v518, %v510
    %v599 = vpack.c.b16 %v519, %v511
    %v600 = vpack.c.b16 %v520, %v512
    %v601 = vpack.c.b16 %v521, %v513
    %v602 = vpack.c.b16 %v522, %v514
    %v603 = vpack.c.b16 %v531, %v523
    %v604 = vpack.c.b16 %v532, %v524
    %v605 = vpack.c.b16 %v533, %v525
    %v606 = vpack.c.b16 %v534, %v526
    %v607 = vpack.c.b16 %v535, %v527
    %v608 = vpack.c.b16 %v536, %v528
    %v609 = vpack.c.b16 %v537, %v529
    %v610 = vpack.c.b16 %v538, %v530
    %v611 = vpack.c.b16 %v547, %v539
    %v612 = vpack.c.b16 %v548, %v540
    %v613 = vpack.c.b16 %v549, %v541
    %v614 = vpack.c.b16 %v550, %v542
    %v615 = vpack.c.b16 %v551, %v543
    %v616 = vpack.c.b16 %v552, %v544
    %v617 = vpack.c.b16 %v553, %v545
    %v618 = vpack.c.b16 %v554, %v546
    %683 = vmatprep.subr.bf16.mxu0 %v612
    %684 = vmatpush1.bf16.msra.mxu0 %v611
    %685 = vmatprep.subr.bf16.mxu0 %v604
    %686 = vmatpush1.bf16.msra.mxu0 %v603
    %687 = vmatprep.subr.bf16.mxu0 %v596
    %688 = vmatpush1.bf16.msra.mxu0 %v595
    %689 = vmatprep.subr.bf16.mxu0 %v588
    %690 = vmatpush1.bf16.msra.mxu0 %v587
    %691 = vmatprep.subr.bf16.mxu0 %v580
    %692 = vmatpush1.bf16.msra.mxu0 %v579
    %693 = vmatprep.subr.bf16.mxu0 %v572
    %694 = vmatpush1.bf16.msra.mxu0 %v571
    %695 = vmatprep.subr.bf16.mxu0 %v564
    %696 = vmatpush1.bf16.msra.mxu0 %v563
    %697 = vmatprep.subr.bf16.mxu0 %v556
    %698 = vmatpush1.bf16.msra.mxu0 %v555
    %699 = vmatprep.subr.bf16.mxu0 0
    %700 = vmatpush2.bf16.msra.mxu0 0
    %701 = vmatprep.subr.bf16.mxu0 0
    %702 = vmatpush2.bf16.msra.mxu0 0
    %703 = vmatprep.subr.bf16.mxu0 0
    %704 = vmatpush2.bf16.msra.mxu0 0
    %705 = vmatprep.subr.bf16.mxu0 0
    %706 = vmatpush2.bf16.msra.mxu0 0
    %707 = vmatprep.subr.bf16.mxu0 0
    %708 = vmatpush2.bf16.msra.mxu0 0
    %709 = vmatprep.subr.bf16.mxu0 0
    %710 = vmatpush2.bf16.msra.mxu0 0
    %711 = vmatprep.subr.bf16.mxu0 0
    %712 = vmatpush2.bf16.msra.mxu0 0
    %713 = vmatprep.subr.bf16.mxu0 0
    %714 = vmatpush2.bf16.msra.mxu0 0
    %715 = vmatprep.mubr.bf16.mxu0 0
    %716 = vmatmul.mubr.bf16.gmra.mxu0 %v255
    %v717 = vpop.f32.mrf.mxu0
    %v718 = vadd.f32 %v326, %v717
    %v719 = vpop.f32.mrf.mxu0
    %v720 = vadd.f32 %v330, %v719
    %v721 = vpop.f32.mrf.mxu0
    %v722 = vadd.f32 %v326, %v721
    %v723 = vpop.f32.mrf.mxu0
    %v724 = vadd.f32 %v330, %v723
    %725 = vmatprep.mubr.bf16.mxu0 0
    %726 = vmatmul.mubr.bf16.gmra.mxu0 %v256
    %v727 = vpop.f32.mrf.mxu0
    %v728 = vadd.f32 %v326, %v727
    %v729 = vpop.f32.mrf.mxu0
    %v730 = vadd.f32 %v330, %v729
    %v731 = vpop.f32.mrf.mxu0
    %v732 = vadd.f32 %v326, %v731
    %v733 = vpop.f32.mrf.mxu0
    %v734 = vadd.f32 %v330, %v733
    %735 = vdwg.mxu0
    %736 = vmatprep.subr.bf16.mxu0 %v614
    %737 = vmatpush1.bf16.msra.mxu0 %v613
    %738 = vmatprep.subr.bf16.mxu0 %v606
    %739 = vmatpush1.bf16.msra.mxu0 %v605
    %740 = vmatprep.subr.bf16.mxu0 %v598
    %741 = vmatpush1.bf16.msra.mxu0 %v597
    %742 = vmatprep.subr.bf16.mxu0 %v590
    %743 = vmatpush1.bf16.msra.mxu0 %v589
    %744 = vmatprep.subr.bf16.mxu0 %v582
    %745 = vmatpush1.bf16.msra.mxu0 %v581
    %746 = vmatprep.subr.bf16.mxu0 %v574
    %747 = vmatpush1.bf16.msra.mxu0 %v573
    %748 = vmatprep.subr.bf16.mxu0 %v566
    %749 = vmatpush1.bf16.msra.mxu0 %v565
    %750 = vmatprep.subr.bf16.mxu0 %v558
    %751 = vmatpush1.bf16.msra.mxu0 %v557
    %752 = vmatprep.subr.bf16.mxu0 0
    %753 = vmatpush2.bf16.msra.mxu0 0
    %754 = vmatprep.subr.bf16.mxu0 0
    %755 = vmatpush2.bf16.msra.mxu0 0
    %756 = vmatprep.subr.bf16.mxu0 0
    %757 = vmatpush2.bf16.msra.mxu0 0
    %758 = vmatprep.subr.bf16.mxu0 0
    %759 = vmatpush2.bf16.msra.mxu0 0
    %760 = vmatprep.subr.bf16.mxu0 0
    %761 = vmatpush2.bf16.msra.mxu0 0
    %762 = vmatprep.subr.bf16.mxu0 0
    %763 = vmatpush2.bf16.msra.mxu0 0
    %764 = vmatprep.subr.bf16.mxu0 0
    %765 = vmatpush2.bf16.msra.mxu0 0
    %766 = vmatprep.subr.bf16.mxu0 0
    %767 = vmatpush2.bf16.msra.mxu0 0
    %768 = vmatprep.mubr.bf16.mxu0 0
    %769 = vmatmul.mubr.bf16.gmra.mxu0 %v255
    %v770 = vpop.f32.mrf.mxu0
    %v771 = vadd.f32 %v334, %v770
    %v772 = vpop.f32.mrf.mxu0
    %v773 = vadd.f32 %v338, %v772
    %v774 = vpop.f32.mrf.mxu0
    %v775 = vadd.f32 %v334, %v774
    %v776 = vpop.f32.mrf.mxu0
    %v777 = vadd.f32 %v338, %v776
    %778 = vmatprep.mubr.bf16.mxu0 0
    %779 = vmatmul.mubr.bf16.gmra.mxu0 %v256
    %v780 = vpop.f32.mrf.mxu0
    %v781 = vadd.f32 %v334, %v780
    %v782 = vpop.f32.mrf.mxu0
    %v783 = vadd.f32 %v338, %v782
    %v784 = vpop.f32.mrf.mxu0
    %v785 = vadd.f32 %v334, %v784
    %v786 = vpop.f32.mrf.mxu0
    %v787 = vadd.f32 %v338, %v786
    %788 = vdwg.mxu0
    %789 = vmatprep.subr.bf16.mxu0 %v616
    %790 = vmatpush1.bf16.msra.mxu0 %v615
    %791 = vmatprep.subr.bf16.mxu0 %v608
    %792 = vmatpush1.bf16.msra.mxu0 %v607
    %793 = vmatprep.subr.bf16.mxu0 %v600
    %794 = vmatpush1.bf16.msra.mxu0 %v599
    %795 = vmatprep.subr.bf16.mxu0 %v592
    %796 = vmatpush1.bf16.msra.mxu0 %v591
    %797 = vmatprep.subr.bf16.mxu0 %v584
    %798 = vmatpush1.bf16.msra.mxu0 %v583
    %799 = vmatprep.subr.bf16.mxu0 %v576
    %800 = vmatpush1.bf16.msra.mxu0 %v575
    %801 = vmatprep.subr.bf16.mxu0 %v568
    %802 = vmatpush1.bf16.msra.mxu0 %v567
    %803 = vmatprep.subr.bf16.mxu0 %v560
    %804 = vmatpush1.bf16.msra.mxu0 %v559
    %805 = vmatprep.subr.bf16.mxu0 0
    %806 = vmatpush2.bf16.msra.mxu0 0
    %807 = vmatprep.subr.bf16.mxu0 0
    %808 = vmatpush2.bf16.msra.mxu0 0
    %809 = vmatprep.subr.bf16.mxu0 0
    %810 = vmatpush2.bf16.msra.mxu0 0
    %811 = vmatprep.subr.bf16.mxu0 0
    %812 = vmatpush2.bf16.msra.mxu0 0
    %813 = vmatprep.subr.bf16.mxu0 0
    %814 = vmatpush2.bf16.msra.mxu0 0
    %815 = vmatprep.subr.bf16.mxu0 0
    %816 = vmatpush2.bf16.msra.mxu0 0
    %817 = vmatprep.subr.bf16.mxu0 0
    %818 = vmatpush2.bf16.msra.mxu0 0
    %819 = vmatprep.subr.bf16.mxu0 0
    %820 = vmatpush2.bf16.msra.mxu0 0
    %821 = vmatprep.mubr.bf16.mxu0 0
    %822 = vmatmul.mubr.bf16.gmra.mxu0 %v255
    %v823 = vpop.f32.mrf.mxu0
    %v824 = vadd.f32 %v342, %v823
    %v825 = vpop.f32.mrf.mxu0
    %v826 = vadd.f32 %v346, %v825
    %v827 = vpop.f32.mrf.mxu0
    %v828 = vadd.f32 %v342, %v827
    %v829 = vpop.f32.mrf.mxu0
    %v830 = vadd.f32 %v346, %v829
    %831 = vmatprep.mubr.bf16.mxu0 0
    %832 = vmatmul.mubr.bf16.gmra.mxu0 %v256
    %v833 = vpop.f32.mrf.mxu0
    %v834 = vadd.f32 %v342, %v833
    %v835 = vpop.f32.mrf.mxu0
    %v836 = vadd.f32 %v346, %v835
    %v837 = vpop.f32.mrf.mxu0
    %v838 = vadd.f32 %v342, %v837
    %v839 = vpop.f32.mrf.mxu0
    %v840 = vadd.f32 %v346, %v839
    %841 = vdwg.mxu0
    %842 = vmatprep.subr.bf16.mxu0 %v618
    %843 = vmatpush1.bf16.msra.mxu0 %v617
    %844 = vmatprep.subr.bf16.mxu0 %v610
    %845 = vmatpush1.bf16.msra.mxu0 %v609
    %846 = vmatprep.subr.bf16.mxu0 %v602
    %847 = vmatpush1.bf16.msra.mxu0 %v601
    %848 = vmatprep.subr.bf16.mxu0 %v594
    %849 = vmatpush1.bf16.msra.mxu0 %v593
    %850 = vmatprep.subr.bf16.mxu0 %v586
    %851 = vmatpush1.bf16.msra.mxu0 %v585
    %852 = vmatprep.subr.bf16.mxu0 %v578
    %853 = vmatpush1.bf16.msra.mxu0 %v577
    %854 = vmatprep.subr.bf16.mxu0 %v570
    %855 = vmatpush1.bf16.msra.mxu0 %v569
    %856 = vmatprep.subr.bf16.mxu0 %v562
    %857 = vmatpush1.bf16.msra.mxu0 %v561
    %858 = vmatprep.subr.bf16.mxu0 0
    %859 = vmatpush2.bf16.msra.mxu0 0
    %860 = vmatprep.subr.bf16.mxu0 0
    %861 = vmatpush2.bf16.msra.mxu0 0
    %862 = vmatprep.subr.bf16.mxu0 0
    %863 = vmatpush2.bf16.msra.mxu0 0
    %864 = vmatprep.subr.bf16.mxu0 0
    %865 = vmatpush2.bf16.msra.mxu0 0
    %866 = vmatprep.subr.bf16.mxu0 0
    %867 = vmatpush2.bf16.msra.mxu0 0
    %868 = vmatprep.subr.bf16.mxu0 0
    %869 = vmatpush2.bf16.msra.mxu0 0
    %870 = vmatprep.subr.bf16.mxu0 0
    %871 = vmatpush2.bf16.msra.mxu0 0
    %872 = vmatprep.subr.bf16.mxu0 0
    %873 = vmatpush2.bf16.msra.mxu0 0
    %874 = vmatprep.mubr.bf16.mxu0 0
    %875 = vmatmul.mubr.bf16.gmra.mxu0 %v255
    %v876 = vpop.f32.mrf.mxu0
    %v877 = vadd.f32 %v350, %v876
    %v878 = vpop.f32.mrf.mxu0
    %v879 = vadd.f32 %v354, %v878
    %v880 = vpop.f32.mrf.mxu0
    %v881 = vadd.f32 %v350, %v880
    %v882 = vpop.f32.mrf.mxu0
    %v883 = vadd.f32 %v354, %v882
    %884 = vmatprep.mubr.bf16.mxu0 0
    %885 = vmatmul.mubr.bf16.gmra.mxu0 %v256
    %v886 = vpop.f32.mrf.mxu0
    %v887 = vadd.f32 %v350, %v886
    %v888 = vpop.f32.mrf.mxu0
    %v889 = vadd.f32 %v354, %v888
    %v890 = vpop.f32.mrf.mxu0
    %v891 = vadd.f32 %v350, %v890
    %v892 = vpop.f32.mrf.mxu0
    %v893 = vadd.f32 %v354, %v892
    %894 = vdwg.mxu0
    %895 = vst [vmem:[%s6] sm:$0xff] %v718
    %896 = vst [vmem:[%s6 + $0x8] sm:$0xff] %v720
    %897 = vst [vmem:[%s6 + $0x10] sm:$0xff] %v771
    %898 = vst [vmem:[%s6 + $0x18] sm:$0xff] %v773
    %899 = vst [vmem:[%s6 + $0x20] sm:$0xff] %v824
    %900 = vst [vmem:[%s6 + $0x28] sm:$0xff] %v826
    %901 = vst [vmem:[%s6 + $0x30] sm:$0xff] %v877
    %902 = vst [vmem:[%s6 + $0x38] sm:$0xff] %v879
    %903 = vst [vmem:[%s6 + $0x40] sm:$0xff] %v722
    %904 = vst [vmem:[%s6 + $0x48] sm:$0xff] %v724
    %905 = vst [vmem:[%s6 + $0x50] sm:$0xff] %v775
    %906 = vst [vmem:[%s6 + $0x58] sm:$0xff] %v777
    %907 = vst [vmem:[%s6 + $0x60] sm:$0xff] %v828
    %908 = vst [vmem:[%s6 + $0x68] sm:$0xff] %v830
    %909 = vst [vmem:[%s6 + $0x70] sm:$0xff] %v881
    %910 = vst [vmem:[%s6 + $0x78] sm:$0xff] %v883
    %911 = vst [vmem:[%s6 + $0x80] sm:$0xff] %v728
    %912 = vst [vmem:[%s6 + $0x88] sm:$0xff] %v730
    %913 = vst [vmem:[%s6 + $0x90] sm:$0xff] %v781
    %914 = vst [vmem:[%s6 + $0x98] sm:$0xff] %v783
    %915 = vst [vmem:[%s6 + $0xa0] sm:$0xff] %v834
    %916 = vst [vmem:[%s6 + $0xa8] sm:$0xff] %v836
    %917 = vst [vmem:[%s6 + $0xb0] sm:$0xff] %v887
    %918 = vst [vmem:[%s6 + $0xb8] sm:$0xff] %v889
    %919 = vst [vmem:[%s6 + $0xc0] sm:$0xff] %v732
    %920 = vst [vmem:[%s6 + $0xc8] sm:$0xff] %v734
    %921 = vst [vmem:[%s6 + $0xd0] sm:$0xff] %v785
    %922 = vst [vmem:[%s6 + $0xd8] sm:$0xff] %v787
    %923 = vst [vmem:[%s6 + $0xe0] sm:$0xff] %v838
    %924 = vst [vmem:[%s6 + $0xe8] sm:$0xff] %v840
    %925 = vst [vmem:[%s6 + $0xf0] sm:$0xff] %v891
    %926 = vst [vmem:[%s6 + $0xf8] sm:$0xff] %v893
    // Predicated region
    $region34: #{reduction_actor_critic_forward.2} parent=1 // pred_check
      _
    $region35: #{reduction_actor_critic_forward.2} parent=1 // pred_check_branch
      %928 = sbr.rel (0) target = $region37
    $region36: #{reduction_actor_critic_forward.2} parent=1 // pred_region
      _
    $region37: #{reduction_actor_critic_forward.2} parent=1 // pred_fallthru
      _
    // Predicated region
    $region38: #{reduction_actor_critic_forward.2} parent=1 // pred_check
      _
    $region39: #{reduction_actor_critic_forward.2} parent=1 // pred_check_branch
      %930 = sbr.rel (0) target = $region41
    $region40: #{reduction_actor_critic_forward.2} parent=1 // pred_region
      _
    $region41: #{reduction_actor_critic_forward.2} parent=1 // pred_fallthru
      _
    %931 = vsyncpa [#allocation3], 1
    %932 = vsyncpa [#allocation5], 1

// kernel: reduction_actor_critic_forward.3
$region0: #{reduction_actor_critic_forward.3}
  #allocation0 [shape = 'u32[]', space=smem, size = 0x4, offset = 0x4, fixed_abs, tag = 'smem constant byte address 0x4 - core index']
  #allocation1 [shape = 'u32[144,128]{1,0:T(1,128)}', space=vmem, size = 0x12000, scoped, tag = 'internal scratch']
  #allocation2 [shape = 'f32[2,16,256]{2,1,0:T(8,128)}', space=vmem, size = 0x8000, scoped, tag = 'scratch operand']
  #allocation3 [shape = 'f32[2,16,256]{2,1,0:T(8,128)}', space=vmem, size = 0x8000, scoped, tag = 'scratch operand']
  %s0 = inlined_call_operand.vmem [shape: f32[32,1024], index: 0, kind: input, shape index: {}]
  %s1 = inlined_call_operand.vmem [shape: f32[32,256], index: 1, kind: input, shape index: {}]
  %s2 = inlined_call_operand.vmem [shape: f32[32,256], index: 2, kind: input, shape index: {}]
  %s3 = inlined_call_operand.hbm [shape: bf16[256,1024], index: 3, kind: input, shape index: {}]
  %s4 = inlined_call_operand.vmem [shape: bf16[256,128], index: 4, kind: input, shape index: {}]
  %s5 = inlined_call_operand.vmem [shape: bf16[256,128], index: 5, kind: input, shape index: {}]
  %s6 = inlined_call_operand.vmem [shape: f32[1,128], index: 6, kind: input, shape index: {}]
  %s7 = inlined_call_operand.vmem [shape: f32[32,128], index: 7, kind: output, shape index: {0}]
  %s8 = inlined_call_operand.hbm [shape: f32[32,256], index: 8, kind: output, shape index: {1}]
  %s9 = inlined_call_operand.hbm [shape: f32[32,256], index: 9, kind: output, shape index: {2}]
  %10 = xla_tuple %s7, %s8, %s9
  %s11 = sld [smem:[#allocation0]]
  $region89: #{reduction_actor_critic_forward.3} parent=0
    _
  %s13 = ssub.s32 1, %s11
  %s14 = scalar_select 0, %s13, %s11
  $region1: #{reduction_actor_critic_forward.3} parent=0
    #allocation4 [shape = 'u8[524288]{0}', space=vmem, size = 0x80000, scoped, tag = 'input window, operand 3, single buffered']
    #allocation5 [shape = 's32[2]{0}', space=sflag, size = 0x8, scoped, tag = 'scoped memory for reduction_actor_critic_forward.3']
    #allocation6 [shape = 's32[2]{0}', space=sflag, size = 0x8, scoped, tag = 'scoped memory for reduction_actor_critic_forward.3']
    #allocation7 [shape = 'u8[32768]{0}', space=vmem, size = 0x8000, scoped, tag = 'output window, operand 1']
    #allocation8 [shape = 'u8[32768]{0}', space=vmem, size = 0x8000, scoped, tag = 'output window, operand 2']
    #allocation9 [shape = 's32[2]{0}', space=sflag, size = 0x8, scoped, tag = 'scoped memory for reduction_actor_critic_forward.3']
    %15 = vsyncpa [#allocation5], 0
    %16 = vsyncpa [#allocation6], 0
    %s17 = scalar_lea.sflag [#allocation6], 1
    %18 = vsyncpa %s17, 0
    %19 = vsyncpa [#allocation9], 0
    %s20 = scalar_lea.sflag [#allocation9], 1
    %21 = vsyncpa %s20, 0
    loop: start=0, step=1, limit=4
    $region2: #{reduction_actor_critic_forward.3} parent=1 // loop_pre_header
      _
    $region3: #{reduction_actor_critic_forward.3} parent=1 // loop_header
      %s23 = sphi 0, %s27
      %p24 = scmp.ge.s32.totalorder %s23, 4
      %s30 = sphi 0, %s42
      %s31 = sphi 0, %s38
      %s32 = sphi 0, %s30
      %s33 = sphi 0, %s31
      %s34 = sphi 0, %s32
      %s35 = sphi 0, %s33
      %s49 = sphi 0, %s51
      %s52 = sphi 0, %s49
      %s53 = sphi 0, %s52
      %s69 = sphi 0, %s53
      %s75 = sphi 0, %s77
      %s78 = sphi 0, %s75
      %s79 = sphi 0, %s78
      %s95 = sphi 0, %s79
      %s101 = sphi 0, %s103
      %s104 = sphi 0, %s101
      %s105 = sphi 0, %s104
      %s121 = sphi 0, %s105
      %s125 = sphi 0, %s125
      %s127 = sphi 0, %s125
      %s128 = sphi 0, %s127
      %s142 = sphi 0, %s128
      %s146 = sphi 0, %s146
      %s148 = sphi 0, %s146
      %s149 = sphi 0, %s148
      %s163 = sphi 0, %s149
      %s167 = sphi 0, %s167
      %s169 = sphi 0, %s167
      %s170 = sphi 0, %s169
      %s184 = sphi 0, %s170
      %s188 = sphi 0, %s188
      %s190 = sphi 0, %s188
      %s191 = sphi 0, %s190
      %s205 = sphi 0, %s191
      %s215 = sphi 0, %s217
      %s218 = sphi 0, %s215
      %s219 = sphi 0, %s218
      %s235 = sphi 0, %s219
      %s241 = sphi 0, %s243
      %s244 = sphi 0, %s241
      %s245 = sphi 0, %s244
      %s261 = sphi 0, %s245
      %s267 = sphi 0, %s269
      %s270 = sphi 0, %s267
      %s271 = sphi 0, %s270
      %s287 = sphi 0, %s271
    $region4: #{reduction_actor_critic_forward.3} parent=1 // loop_header_branch
      %26 = sbr.rel (%p24) target = $region8
    $region5: #{reduction_actor_critic_forward.3} parent=1 // loop_body
      %s28 = ssub.s32 %s23, 1
      %s29 = ssub.s32 %s23, 2
      %s36 = sadd.s32 1, %s31
      %p37 = scmp.ge.s32.totalorder %s36, 1
      %s38 = scalar_select %p37, 0, %s36
      %s39 = sadd.s32 1, %s30
      %s40 = scalar_select %p37, %s39, %s30
      %p41 = scmp.ge.s32.totalorder %s40, 2
      %s42 = scalar_select %p41, 0, %s40
      %s43 = smul.u32 %s31, 2
      %s44 = sadd.s32 %s43, %s30
      %s45 = smul.u32 %s38, 2
      %s46 = sadd.s32 %s45, %s42
      %s47 = ssub.s32 %s44, %s46
      %p48 = scmp.eq.s32.totalorder %s47, 0
      %s50 = sadd.s32 %s49, 1
      %s51 = scalar_select %p48, %s49, %s50
      %p54 = pneg %p48
      %p55 = scmp.eq.s32.totalorder %s23, 1
      %p56 = por %p54, %p55
      %p57 = scmp.ne.s32.totalorder %s49, %s52
      %p58 = scmp.eq.s32.totalorder %s23, 0
      %p59 = por %p57, %p58
      %p60 = scmp.ne.s32.totalorder %s49, %s52
      %p61 = scmp.eq.s32.totalorder %s28, 1
      %p62 = por %p60, %p61
      %p63 = scmp.ne.s32.totalorder %s52, %s53
      %p64 = scmp.eq.s32.totalorder %s28, 0
      %p65 = por %p63, %p64
      %p66 = scmp.ne.s32.totalorder %s52, %s53
      %p67 = scmp.eq.s32.totalorder %s29, 1
      %p68 = por %p66, %p67
      %p70 = scmp.ne.s32.totalorder %s53, %s69
      %p71 = scmp.eq.s32.totalorder %s29, 0
      %p72 = por %p70, %p71
      %s73 = ssub.s32 %s30, %s42
      %p74 = scmp.eq.s32.totalorder %s73, 0
      %s76 = sadd.s32 %s75, 1
      %s77 = scalar_select %p74, %s75, %s76
      %p80 = pneg %p74
      %p81 = scmp.eq.s32.totalorder %s23, 1
      %p82 = por %p80, %p81
      %p83 = scmp.ne.s32.totalorder %s75, %s78
      %p84 = scmp.eq.s32.totalorder %s23, 0
      %p85 = por %p83, %p84
      %p86 = scmp.ne.s32.totalorder %s75, %s78
      %p87 = scmp.eq.s32.totalorder %s28, 1
      %p88 = por %p86, %p87
      %p89 = scmp.ne.s32.totalorder %s78, %s79
      %p90 = scmp.eq.s32.totalorder %s28, 0
      %p91 = por %p89, %p90
      %p92 = scmp.ne.s32.totalorder %s78, %s79
      %p93 = scmp.eq.s32.totalorder %s29, 1
      %p94 = por %p92, %p93
      %p96 = scmp.ne.s32.totalorder %s79, %s95
      %p97 = scmp.eq.s32.totalorder %s29, 0
      %p98 = por %p96, %p97
      %s99 = ssub.s32 %s30, %s42
      %p100 = scmp.eq.s32.totalorder %s99, 0
      %s102 = sadd.s32 %s101, 1
      %s103 = scalar_select %p100, %s101, %s102
      %p106 = pneg %p100
      %p107 = scmp.eq.s32.totalorder %s23, 1
      %p108 = por %p106, %p107
      %p109 = scmp.ne.s32.totalorder %s101, %s104
      %p110 = scmp.eq.s32.totalorder %s23, 0
      %p111 = por %p109, %p110
      %p112 = scmp.ne.s32.totalorder %s101, %s104
      %p113 = scmp.eq.s32.totalorder %s28, 1
      %p114 = por %p112, %p113
      %p115 = scmp.ne.s32.totalorder %s104, %s105
      %p116 = scmp.eq.s32.totalorder %s28, 0
      %p117 = por %p115, %p116
      %p118 = scmp.ne.s32.totalorder %s104, %s105
      %p119 = scmp.eq.s32.totalorder %s29, 1
      %p120 = por %p118, %p119
      %p122 = scmp.ne.s32.totalorder %s105, %s121
      %p123 = scmp.eq.s32.totalorder %s29, 0
      %p124 = por %p122, %p123
      %s126 = sadd.s32 %s125, 1
      %p129 = scmp.eq.s32.totalorder %s23, 1
      %p130 = scmp.ne.s32.totalorder %s125, %s127
      %p131 = scmp.eq.s32.totalorder %s23, 0
      %p132 = por %p130, %p131
      %p133 = scmp.ne.s32.totalorder %s125, %s127
      %p134 = scmp.eq.s32.totalorder %s28, 1
      %p135 = por %p133, %p134
      %p136 = scmp.ne.s32.totalorder %s127, %s128
      %p137 = scmp.eq.s32.totalorder %s28, 0
      %p138 = por %p136, %p137
      %p139 = scmp.ne.s32.totalorder %s127, %s128
      %p140 = scmp.eq.s32.totalorder %s29, 1
      %p141 = por %p139, %p140
      %p143 = scmp.ne.s32.totalorder %s128, %s142
      %p144 = scmp.eq.s32.totalorder %s29, 0
      %p145 = por %p143, %p144
      %s147 = sadd.s32 %s146, 1
      %p150 = scmp.eq.s32.totalorder %s23, 1
      %p151 = scmp.ne.s32.totalorder %s146, %s148
      %p152 = scmp.eq.s32.totalorder %s23, 0
      %p153 = por %p151, %p152
      %p154 = scmp.ne.s32.totalorder %s146, %s148
      %p155 = scmp.eq.s32.totalorder %s28, 1
      %p156 = por %p154, %p155
      %p157 = scmp.ne.s32.totalorder %s148, %s149
      %p158 = scmp.eq.s32.totalorder %s28, 0
      %p159 = por %p157, %p158
      %p160 = scmp.ne.s32.totalorder %s148, %s149
      %p161 = scmp.eq.s32.totalorder %s29, 1
      %p162 = por %p160, %p161
      %p164 = scmp.ne.s32.totalorder %s149, %s163
      %p165 = scmp.eq.s32.totalorder %s29, 0
      %p166 = por %p164, %p165
      %s168 = sadd.s32 %s167, 1
      %p171 = scmp.eq.s32.totalorder %s23, 1
      %p172 = scmp.ne.s32.totalorder %s167, %s169
      %p173 = scmp.eq.s32.totalorder %s23, 0
      %p174 = por %p172, %p173
      %p175 = scmp.ne.s32.totalorder %s167, %s169
      %p176 = scmp.eq.s32.totalorder %s28, 1
      %p177 = por %p175, %p176
      %p178 = scmp.ne.s32.totalorder %s169, %s170
      %p179 = scmp.eq.s32.totalorder %s28, 0
      %p180 = por %p178, %p179
      %p181 = scmp.ne.s32.totalorder %s169, %s170
      %p182 = scmp.eq.s32.totalorder %s29, 1
      %p183 = por %p181, %p182
      %p185 = scmp.ne.s32.totalorder %s170, %s184
      %p186 = scmp.eq.s32.totalorder %s29, 0
      %p187 = por %p185, %p186
      %s189 = sadd.s32 %s188, 1
      %p192 = scmp.eq.s32.totalorder %s23, 1
      %p193 = scmp.ne.s32.totalorder %s188, %s190
      %p194 = scmp.eq.s32.totalorder %s23, 0
      %p195 = por %p193, %p194
      %p196 = scmp.ne.s32.totalorder %s188, %s190
      %p197 = scmp.eq.s32.totalorder %s28, 1
      %p198 = por %p196, %p197
      %p199 = scmp.ne.s32.totalorder %s190, %s191
      %p200 = scmp.eq.s32.totalorder %s28, 0
      %p201 = por %p199, %p200
      %p202 = scmp.ne.s32.totalorder %s190, %s191
      %p203 = scmp.eq.s32.totalorder %s29, 1
      %p204 = por %p202, %p203
      %p206 = scmp.ne.s32.totalorder %s191, %s205
      %p207 = scmp.eq.s32.totalorder %s29, 0
      %p208 = por %p206, %p207
      %s209 = smul.u32 %s31, 2
      %s210 = sadd.s32 %s209, %s30
      %s211 = smul.u32 %s38, 2
      %s212 = sadd.s32 %s211, %s42
      %s213 = ssub.s32 %s210, %s212
      %p214 = scmp.eq.s32.totalorder %s213, 0
      %s216 = sadd.s32 %s215, 1
      %s217 = scalar_select %p214, %s215, %s216
      %p220 = pneg %p214
      %p221 = scmp.eq.s32.totalorder %s23, 1
      %p222 = por %p220, %p221
      %p223 = scmp.ne.s32.totalorder %s215, %s218
      %p224 = scmp.eq.s32.totalorder %s23, 0
      %p225 = por %p223, %p224
      %p226 = scmp.ne.s32.totalorder %s215, %s218
      %p227 = scmp.eq.s32.totalorder %s28, 1
      %p228 = por %p226, %p227
      %p229 = scmp.ne.s32.totalorder %s218, %s219
      %p230 = scmp.eq.s32.totalorder %s28, 0
      %p231 = por %p229, %p230
      %p232 = scmp.ne.s32.totalorder %s218, %s219
      %p233 = scmp.eq.s32.totalorder %s29, 1
      %p234 = por %p232, %p233
      %p236 = scmp.ne.s32.totalorder %s219, %s235
      %p237 = scmp.eq.s32.totalorder %s29, 0
      %p238 = por %p236, %p237
      %s239 = ssub.s32 %s30, %s42
      %p240 = scmp.eq.s32.totalorder %s239, 0
      %s242 = sadd.s32 %s241, 1
      %s243 = scalar_select %p240, %s241, %s242
      %p246 = pneg %p240
      %p247 = scmp.eq.s32.totalorder %s23, 1
      %p248 = por %p246, %p247
      %p249 = scmp.ne.s32.totalorder %s241, %s244
      %p250 = scmp.eq.s32.totalorder %s23, 0
      %p251 = por %p249, %p250
      %p252 = scmp.ne.s32.totalorder %s241, %s244
      %p253 = scmp.eq.s32.totalorder %s28, 1
      %p254 = por %p252, %p253
      %p255 = scmp.ne.s32.totalorder %s244, %s245
      %p256 = scmp.eq.s32.totalorder %s28, 0
      %p257 = por %p255, %p256
      %p258 = scmp.ne.s32.totalorder %s244, %s245
      %p259 = scmp.eq.s32.totalorder %s29, 1
      %p260 = por %p258, %p259
      %p262 = scmp.ne.s32.totalorder %s245, %s261
      %p263 = scmp.eq.s32.totalorder %s29, 0
      %p264 = por %p262, %p263
      %s265 = ssub.s32 %s30, %s42
      %p266 = scmp.eq.s32.totalorder %s265, 0
      %s268 = sadd.s32 %s267, 1
      %s269 = scalar_select %p266, %s267, %s268
      %p272 = pneg %p266
      %p273 = scmp.eq.s32.totalorder %s23, 1
      %p274 = por %p272, %p273
      %p275 = scmp.ne.s32.totalorder %s267, %s270
      %p276 = scmp.eq.s32.totalorder %s23, 0
      %p277 = por %p275, %p276
      %p278 = scmp.ne.s32.totalorder %s267, %s270
      %p279 = scmp.eq.s32.totalorder %s28, 1
      %p280 = por %p278, %p279
      %p281 = scmp.ne.s32.totalorder %s270, %s271
      %p282 = scmp.eq.s32.totalorder %s28, 0
      %p283 = por %p281, %p282
      %p284 = scmp.ne.s32.totalorder %s270, %s271
      %p285 = scmp.eq.s32.totalorder %s29, 1
      %p286 = por %p284, %p285
      %p288 = scmp.ne.s32.totalorder %s271, %s287
      %p289 = scmp.eq.s32.totalorder %s29, 0
      %p290 = por %p288, %p289
      %p291 = scmp.le.s32.totalorder 1, %s23
      %p292 = scmp.lt.s32.totalorder %s23, 3
      %p293 = pnand %p291, %p292
      %p294 = pneg %p293
      // Predicated region
      $region9: #{reduction_actor_critic_forward.3} parent=5 // pred_check
        _
      $region10: #{reduction_actor_critic_forward.3} parent=5 // pred_check_branch
        %296 = sbr.rel (%p293) target = $region12
      $region11: #{reduction_actor_critic_forward.3} parent=5 // pred_region
        %s297 = ssub.s32 %s23, 1
        // Predicated region
        $region13: #{reduction_actor_critic_forward.3} parent=11 // pred_check
          %p298 = pneg %p138
        $region14: #{reduction_actor_critic_forward.3} parent=11 // pred_check_branch
          %300 = sbr.rel (%p298) target = $region16
        $region15: #{reduction_actor_critic_forward.3} parent=11 // pred_region
          %s302 = ssub.s32 16384, 16384
          %303 = vsyncadd [#allocation5], %s302
          %s304 = sshll.u32 [#allocation4], 4
          %s305 = int_to_ptr.vmem [resolvable:$true] %s304
          %310 = dma.hbm_to_vmem [thread:$0]  %s3, 16384, %s305, [#allocation5], 512, 512, 32
        $region16: #{reduction_actor_critic_forward.3} parent=11 // pred_fallthru
          _
        // Predicated region
        $region17: #{reduction_actor_critic_forward.3} parent=11 // pred_check
          %p311 = pneg %p159
        $region18: #{reduction_actor_critic_forward.3} parent=11 // pred_check_branch
          %313 = sbr.rel (%p311) target = $region20
        $region19: #{reduction_actor_critic_forward.3} parent=11 // pred_region
          _
        $region20: #{reduction_actor_critic_forward.3} parent=11 // pred_fallthru
          _
        // Predicated region
        $region21: #{reduction_actor_critic_forward.3} parent=11 // pred_check
          %p314 = pneg %p180
        $region22: #{reduction_actor_critic_forward.3} parent=11 // pred_check_branch
          %316 = sbr.rel (%p314) target = $region24
        $region23: #{reduction_actor_critic_forward.3} parent=11 // pred_region
          _
        $region24: #{reduction_actor_critic_forward.3} parent=11 // pred_fallthru
          _
        // Predicated region
        $region25: #{reduction_actor_critic_forward.3} parent=11 // pred_check
          %p317 = pneg %p201
        $region26: #{reduction_actor_critic_forward.3} parent=11 // pred_check_branch
          %319 = sbr.rel (%p317) target = $region28
        $region27: #{reduction_actor_critic_forward.3} parent=11 // pred_region
          _
        $region28: #{reduction_actor_critic_forward.3} parent=11 // pred_fallthru
          _
      $region12: #{reduction_actor_critic_forward.3} parent=5 // pred_fallthru
        _
      %p320 = scmp.lt.s32.totalorder %s23, 2
      // Predicated region
      $region29: #{reduction_actor_critic_forward.3} parent=5 // pred_check
        %p321 = pneg %p320
      $region30: #{reduction_actor_critic_forward.3} parent=5 // pred_check_branch
        %323 = sbr.rel (%p321) target = $region32
      $region31: #{reduction_actor_critic_forward.3} parent=5 // pred_region
        // Predicated region
        $region33: #{reduction_actor_critic_forward.3} parent=31 // pred_check
          %p324 = pneg %p59
        $region34: #{reduction_actor_critic_forward.3} parent=31 // pred_check_branch
          %326 = sbr.rel (%p324) target = $region36
        $region35: #{reduction_actor_critic_forward.3} parent=31 // pred_region
          %s327 = smul.u32 %s31, 2
          %s328 = sadd.s32 %s327, %s30
          %s329 = smul.u32 2, %s328
          %p330 = scmp.lt.s32.totalorder %s329, 3
          %s331 = scalar_select %p330, %s329, 3
          %s332 = smul.addr %s331, 8
          %s333 = smul.addr %s332, 8
          %s334 = scalar_lea.vmem %s0, %s333
          %s335 = smul.u32 %s31, 2
          %s336 = sadd.s32 %s335, %s30
          %s337 = smul.u32 2, %s336
        $region36: #{reduction_actor_critic_forward.3} parent=31 // pred_fallthru
          _
        // Predicated region
        $region37: #{reduction_actor_critic_forward.3} parent=31 // pred_check
          %p338 = pneg %p85
        $region38: #{reduction_actor_critic_forward.3} parent=31 // pred_check_branch
          %340 = sbr.rel (%p338) target = $region40
        $region39: #{reduction_actor_critic_forward.3} parent=31 // pred_region
          %s341 = smul.u32 2, %s30
          %p342 = scmp.lt.s32.totalorder %s341, 3
          %s343 = scalar_select %p342, %s341, 3
          %s344 = smul.addr %s343, 2
          %s345 = smul.addr %s344, 8
          %s346 = scalar_lea.vmem %s1, %s345
          %s347 = smul.u32 2, %s30
        $region40: #{reduction_actor_critic_forward.3} parent=31 // pred_fallthru
          _
        // Predicated region
        $region41: #{reduction_actor_critic_forward.3} parent=31 // pred_check
          %p348 = pneg %p111
        $region42: #{reduction_actor_critic_forward.3} parent=31 // pred_check_branch
          %350 = sbr.rel (%p348) target = $region44
        $region43: #{reduction_actor_critic_forward.3} parent=31 // pred_region
          %s351 = smul.u32 2, %s30
          %p352 = scmp.lt.s32.totalorder %s351, 3
          %s353 = scalar_select %p352, %s351, 3
          %s354 = smul.addr %s353, 2
          %s355 = smul.addr %s354, 8
          %s356 = scalar_lea.vmem %s2, %s355
          %s357 = smul.u32 2, %s30
        $region44: #{reduction_actor_critic_forward.3} parent=31 // pred_fallthru
          _
      $region32: #{reduction_actor_critic_forward.3} parent=5 // pred_fallthru
        _
      %p358 = scmp.le.s32.totalorder 1, %s23
      %p359 = scmp.lt.s32.totalorder %s23, 3
      %p360 = pnand %p358, %p359
      %p361 = pneg %p360
      // Predicated region
      $region45: #{reduction_actor_critic_forward.3} parent=5 // pred_check
        _
      $region46: #{reduction_actor_critic_forward.3} parent=5 // pred_check_branch
        %363 = sbr.rel (%p360) target = $region48
      $region47: #{reduction_actor_critic_forward.3} parent=5 // pred_region
        %s364 = ssub.s32 %s23, 1
        // Predicated region
        $region49: #{reduction_actor_critic_forward.3} parent=47 // pred_check
          %p365 = pneg %p138
        $region50: #{reduction_actor_critic_forward.3} parent=47 // pred_check_branch
          %367 = sbr.rel (%p365) target = $region52
        $region51: #{reduction_actor_critic_forward.3} parent=47 // pred_region
          %368 = dma.done [#allocation5], 16384
        $region52: #{reduction_actor_critic_forward.3} parent=47 // pred_fallthru
          _
        %s369 = smul.u32 %s33, 2
        %s370 = sadd.s32 %s369, %s32
        %s371 = smul.u32 2, %s370
        %p372 = scmp.lt.s32.totalorder %s371, 3
        %s373 = scalar_select %p372, %s371, 3
        %s374 = smul.addr %s373, 8
        %s375 = smul.addr %s374, 8
        %s376 = scalar_lea.vmem %s0, %s375
        %p377 = pneg %p65
        %p378 = pneg %p62
        %s379 = smul.u32 2, %s32
        %p380 = scmp.lt.s32.totalorder %s379, 3
        %s381 = scalar_select %p380, %s379, 3
        %s382 = smul.addr %s381, 2
        %s383 = smul.addr %s382, 8
        %s384 = scalar_lea.vmem %s1, %s383
        %p385 = pneg %p91
        %p386 = pneg %p88
        %s387 = smul.u32 2, %s32
        %p388 = scmp.lt.s32.totalorder %s387, 3
        %s389 = scalar_select %p388, %s387, 3
        %s390 = smul.addr %s389, 2
        %s391 = smul.addr %s390, 8
        %s392 = scalar_lea.vmem %s2, %s391
        %p393 = pneg %p117
        %p394 = pneg %p114
        %p395 = pneg %p138
        %p396 = pneg %p135
        %p397 = pneg %p159
        %p398 = pneg %p156
        %p399 = pneg %p180
        %p400 = pneg %p177
        %p401 = pneg %p201
        %p402 = pneg %p198
        %p403 = pneg %p231
        %p404 = pneg %p228
        %s405 = smul.u32 %s33, 2
        %s406 = sadd.s32 %s405, %s32
        %s407 = smul.u32 2, %s406
        %p408 = scmp.lt.s32.totalorder %s407, 3
        %s409 = scalar_select %p408, %s407, 3
        %s410 = smul.addr %s409, 8
        %s411 = scalar_lea.vmem %s7, %s410
        %p412 = pneg %p257
        %p413 = pneg %p254
        %s414 = sand.u32 %s244, 1
        %s415 = scalar_lea.sflag [#allocation6], %s414
        %s416 = sand.u32 %s244, 1
        %s417 = smul.addr %s416, 32
        %s418 = scalar_lea.vmem [#allocation7], %s417
        %p419 = pneg %p283
        %p420 = pneg %p280
        %s421 = sand.u32 %s270, 1
        %s422 = scalar_lea.sflag [#allocation9], %s421
        %s423 = sand.u32 %s270, 1
        %s424 = smul.addr %s423, 32
        %s425 = scalar_lea.vmem [#allocation8], %s424
        %s426 = smul.u32 %s33, 2
        %s427 = sadd.s32 %s426, %s32
        %s428 = smul.u32 2, %s427
        %p429 = scmp.lt.s32.totalorder %s428, 3
        %s430 = scalar_select %p429, %s428, 3
        %s431 = smul.addr %s430, 8
        %s432 = smul.addr %s431, 8
        %s433 = scalar_lea.vmem %s0, %s432
        %s434 = smul.u32 %s33, 2
        %s435 = sadd.s32 %s434, %s32
        %s436 = smul.u32 2, %s435
        %s437 = smul.u32 2, %s32
        %p438 = scmp.lt.s32.totalorder %s437, 3
        %s439 = scalar_select %p438, %s437, 3
        %s440 = smul.addr %s439, 2
        %s441 = smul.addr %s440, 8
        %s442 = scalar_lea.vmem %s1, %s441
        %s443 = smul.u32 2, %s32
        %s444 = smul.u32 2, %s32
        %p445 = scmp.lt.s32.totalorder %s444, 3
        %s446 = scalar_select %p445, %s444, 3
        %s447 = smul.addr %s446, 2
        %s448 = smul.addr %s447, 8
        %s449 = scalar_lea.vmem %s2, %s448
        %s450 = smul.u32 2, %s32
        %s451 = smul.u32 %s33, 2
        %s452 = sadd.s32 %s451, %s32
        %s453 = smul.u32 2, %s452
        %p454 = scmp.lt.s32.totalorder %s453, 3
        %s455 = scalar_select %p454, %s453, 3
        %s456 = smul.addr %s455, 8
        %s457 = scalar_lea.vmem %s7, %s456
        %s458 = smul.u32 %s33, 2
        %s459 = sadd.s32 %s458, %s32
        %s460 = smul.u32 2, %s459
        %s461 = smul.u32 2, %s32
        %s462 = smul.u32 2, %s32
        %p464 = scmp.eq.s32.totalorder %s33, 0
        // Predicated region
        $region53: #{reduction_actor_critic_forward.3} parent=47 // pred_check
          %p465 = pneg %p464
        $region54: #{reduction_actor_critic_forward.3} parent=47 // pred_check_branch
          %467 = sbr.rel (%p465) target = $region56
        $region55: #{reduction_actor_critic_forward.3} parent=47 // pred_region
          %v468 = vld [vmem:[%s442] sm:$0xff]
          %v469 = vld [vmem:[%s442 + $0x8] sm:$0xff]
          %v470 = vld [vmem:[%s442 + $0x10] sm:$0xff]
          %v471 = vld [vmem:[%s442 + $0x18] sm:$0xff]
          %s472 = smul.u32 %s32, 4
          %s473 = smul.addr %s472, 8
          %s474 = scalar_lea.vmem [#allocation2], %s473
          %475 = vst [vmem:[%s474] sm:$0xff] %v468
          %476 = vst [vmem:[%s474 + $0x8] sm:$0xff] %v469
          %477 = vst [vmem:[%s474 + $0x10] sm:$0xff] %v470
          %478 = vst [vmem:[%s474 + $0x18] sm:$0xff] %v471
          %v479 = vld [vmem:[%s449] sm:$0xff]
          %v480 = vld [vmem:[%s449 + $0x8] sm:$0xff]
          %v481 = vld [vmem:[%s449 + $0x10] sm:$0xff]
          %v482 = vld [vmem:[%s449 + $0x18] sm:$0xff]
          %s483 = smul.addr %s472, 8
          %s484 = scalar_lea.vmem [#allocation3], %s483
          %485 = vst [vmem:[%s484] sm:$0xff] %v479
          %486 = vst [vmem:[%s484 + $0x8] sm:$0xff] %v480
          %487 = vst [vmem:[%s484 + $0x10] sm:$0xff] %v481
          %488 = vst [vmem:[%s484 + $0x18] sm:$0xff] %v482
        $region56: #{reduction_actor_critic_forward.3} parent=47 // pred_fallthru
          _
        %s489 = smul.u32 %s32, 4
        %s490 = smul.addr %s489, 8
        %s491 = scalar_lea.vmem [#allocation2], %s490
        %v492 = vld [vmem:[%s491] sm:$0xff]
        %v493 = vld [vmem:[%s491 + $0x8] sm:$0xff]
        %v494 = vld [vmem:[%s491 + $0x10] sm:$0xff]
        %v495 = vld [vmem:[%s491 + $0x18] sm:$0xff]
        %s496 = smul.addr %s489, 8
        %s497 = scalar_lea.vmem [#allocation3], %s496
        %v498 = vld [vmem:[%s497] sm:$0xff]
        %v499 = vld [vmem:[%s497 + $0x8] sm:$0xff]
        %v500 = vld [vmem:[%s497 + $0x10] sm:$0xff]
        %v501 = vld [vmem:[%s497 + $0x18] sm:$0xff]
        %v502 = vld [vmem:[%s433] sm:$0xff]
        %v503 = vld [vmem:[%s433 + $0x8] sm:$0xff]
        %v504 = vld [vmem:[%s433 + $0x10] sm:$0xff]
        %v505 = vld [vmem:[%s433 + $0x18] sm:$0xff]
        %v506 = vld [vmem:[%s433 + $0x20] sm:$0xff]
        %v507 = vld [vmem:[%s433 + $0x28] sm:$0xff]
        %v508 = vld [vmem:[%s433 + $0x30] sm:$0xff]
        %v509 = vld [vmem:[%s433 + $0x38] sm:$0xff]
        %v510 = vld [vmem:[%s433 + $0x40] sm:$0xff]
        %v511 = vld [vmem:[%s433 + $0x48] sm:$0xff]
        %v512 = vld [vmem:[%s433 + $0x50] sm:$0xff]
        %v513 = vld [vmem:[%s433 + $0x58] sm:$0xff]
        %v514 = vld [vmem:[%s433 + $0x60] sm:$0xff]
        %v515 = vld [vmem:[%s433 + $0x68] sm:$0xff]
        %v516 = vld [vmem:[%s433 + $0x70] sm:$0xff]
        %v517 = vld [vmem:[%s433 + $0x78] sm:$0xff]
        %v518 = vpack.c.bf16 %v494, %v492
        %v519 = vpack.c.bf16 %v495, %v493
        %v520 = vld [vmem:[#allocation4] sm:$0xff]
        %v521 = vld [vmem:[#allocation4 + $0x8] sm:$0xff]
        %v522 = vld [vmem:[#allocation4 + $0x10] sm:$0xff]
        %v523 = vld [vmem:[#allocation4 + $0x18] sm:$0xff]
        %v524 = vld [vmem:[#allocation4 + $0x20] sm:$0xff]
        %v525 = vld [vmem:[#allocation4 + $0x28] sm:$0xff]
        %v526 = vld [vmem:[#allocation4 + $0x30] sm:$0xff]
        %v527 = vld [vmem:[#allocation4 + $0x38] sm:$0xff]
        %v528 = vld [vmem:[#allocation4 + $0x40] sm:$0xff]
        %v529 = vld [vmem:[#allocation4 + $0x48] sm:$0xff]
        %v530 = vld [vmem:[#allocation4 + $0x50] sm:$0xff]
        %v531 = vld [vmem:[#allocation4 + $0x58] sm:$0xff]
        %v532 = vld [vmem:[#allocation4 + $0x60] sm:$0xff]
        %v533 = vld [vmem:[#allocation4 + $0x68] sm:$0xff]
        %v534 = vld [vmem:[#allocation4 + $0x70] sm:$0xff]
        %v535 = vld [vmem:[#allocation4 + $0x78] sm:$0xff]
        %v536 = vld [vmem:[#allocation4 + $0x80] sm:$0xff]
        %v537 = vld [vmem:[#allocation4 + $0x88] sm:$0xff]
        %v538 = vld [vmem:[#allocation4 + $0x90] sm:$0xff]
        %v539 = vld [vmem:[#allocation4 + $0x98] sm:$0xff]
        %v540 = vld [vmem:[#allocation4 + $0xa0] sm:$0xff]
        %v541 = vld [vmem:[#allocation4 + $0xa8] sm:$0xff]
        %v542 = vld [vmem:[#allocation4 + $0xb0] sm:$0xff]
        %v543 = vld [vmem:[#allocation4 + $0xb8] sm:$0xff]
        %v544 = vld [vmem:[#allocation4 + $0xc0] sm:$0xff]
        %v545 = vld [vmem:[#allocation4 + $0xc8] sm:$0xff]
        %v546 = vld [vmem:[#allocation4 + $0xd0] sm:$0xff]
        %v547 = vld [vmem:[#allocation4 + $0xd8] sm:$0xff]
        %v548 = vld [vmem:[#allocation4 + $0xe0] sm:$0xff]
        %v549 = vld [vmem:[#allocation4 + $0xe8] sm:$0xff]
        %v550 = vld [vmem:[#allocation4 + $0xf0] sm:$0xff]
        %v551 = vld [vmem:[#allocation4 + $0xf8] sm:$0xff]
        %v552 = vld [vmem:[#allocation4 + $0x100] sm:$0xff]
        %v553 = vld [vmem:[#allocation4 + $0x108] sm:$0xff]
        %v554 = vld [vmem:[#allocation4 + $0x110] sm:$0xff]
        %v555 = vld [vmem:[#allocation4 + $0x118] sm:$0xff]
        %v556 = vld [vmem:[#allocation4 + $0x120] sm:$0xff]
        %v557 = vld [vmem:[#allocation4 + $0x128] sm:$0xff]
        %v558 = vld [vmem:[#allocation4 + $0x130] sm:$0xff]
        %v559 = vld [vmem:[#allocation4 + $0x138] sm:$0xff]
        %v560 = vld [vmem:[#allocation4 + $0x140] sm:$0xff]
        %v561 = vld [vmem:[#allocation4 + $0x148] sm:$0xff]
        %v562 = vld [vmem:[#allocation4 + $0x150] sm:$0xff]
        %v563 = vld [vmem:[#allocation4 + $0x158] sm:$0xff]
        %v564 = vld [vmem:[#allocation4 + $0x160] sm:$0xff]
        %v565 = vld [vmem:[#allocation4 + $0x168] sm:$0xff]
        %v566 = vld [vmem:[#allocation4 + $0x170] sm:$0xff]
        %v567 = vld [vmem:[#allocation4 + $0x178] sm:$0xff]
        %v568 = vld [vmem:[#allocation4 + $0x180] sm:$0xff]
        %v569 = vld [vmem:[#allocation4 + $0x188] sm:$0xff]
        %v570 = vld [vmem:[#allocation4 + $0x190] sm:$0xff]
        %v571 = vld [vmem:[#allocation4 + $0x198] sm:$0xff]
        %v572 = vld [vmem:[#allocation4 + $0x1a0] sm:$0xff]
        %v573 = vld [vmem:[#allocation4 + $0x1a8] sm:$0xff]
        %v574 = vld [vmem:[#allocation4 + $0x1b0] sm:$0xff]
        %v575 = vld [vmem:[#allocation4 + $0x1b8] sm:$0xff]
        %v576 = vld [vmem:[#allocation4 + $0x1c0] sm:$0xff]
        %v577 = vld [vmem:[#allocation4 + $0x1c8] sm:$0xff]
        %v578 = vld [vmem:[#allocation4 + $0x1d0] sm:$0xff]
        %v579 = vld [vmem:[#allocation4 + $0x1d8] sm:$0xff]
        %v580 = vld [vmem:[#allocation4 + $0x1e0] sm:$0xff]
        %v581 = vld [vmem:[#allocation4 + $0x1e8] sm:$0xff]
        %v582 = vld [vmem:[#allocation4 + $0x1f0] sm:$0xff]
        %v583 = vld [vmem:[#allocation4 + $0x1f8] sm:$0xff]
        %v584 = vld [vmem:[#allocation4 + $0x200] sm:$0xff]
        %v585 = vld [vmem:[#allocation4 + $0x208] sm:$0xff]
        %v586 = vld [vmem:[#allocation4 + $0x210] sm:$0xff]
        %v587 = vld [vmem:[#allocation4 + $0x218] sm:$0xff]
        %v588 = vld [vmem:[#allocation4 + $0x220] sm:$0xff]
        %v589 = vld [vmem:[#allocation4 + $0x228] sm:$0xff]
        %v590 = vld [vmem:[#allocation4 + $0x230] sm:$0xff]
        %v591 = vld [vmem:[#allocation4 + $0x238] sm:$0xff]
        %v592 = vld [vmem:[#allocation4 + $0x240] sm:$0xff]
        %v593 = vld [vmem:[#allocation4 + $0x248] sm:$0xff]
        %v594 = vld [vmem:[#allocation4 + $0x250] sm:$0xff]
        %v595 = vld [vmem:[#allocation4 + $0x258] sm:$0xff]
        %v596 = vld [vmem:[#allocation4 + $0x260] sm:$0xff]
        %v597 = vld [vmem:[#allocation4 + $0x268] sm:$0xff]
        %v598 = vld [vmem:[#allocation4 + $0x270] sm:$0xff]
        %v599 = vld [vmem:[#allocation4 + $0x278] sm:$0xff]
        %v600 = vld [vmem:[#allocation4 + $0x280] sm:$0xff]
        %v601 = vld [vmem:[#allocation4 + $0x288] sm:$0xff]
        %v602 = vld [vmem:[#allocation4 + $0x290] sm:$0xff]
        %v603 = vld [vmem:[#allocation4 + $0x298] sm:$0xff]
        %v604 = vld [vmem:[#allocation4 + $0x2a0] sm:$0xff]
        %v605 = vld [vmem:[#allocation4 + $0x2a8] sm:$0xff]
        %v606 = vld [vmem:[#allocation4 + $0x2b0] sm:$0xff]
        %v607 = vld [vmem:[#allocation4 + $0x2b8] sm:$0xff]
        %v608 = vld [vmem:[#allocation4 + $0x2c0] sm:$0xff]
        %v609 = vld [vmem:[#allocation4 + $0x2c8] sm:$0xff]
        %v610 = vld [vmem:[#allocation4 + $0x2d0] sm:$0xff]
        %v611 = vld [vmem:[#allocation4 + $0x2d8] sm:$0xff]
        %v612 = vld [vmem:[#allocation4 + $0x2e0] sm:$0xff]
        %v613 = vld [vmem:[#allocation4 + $0x2e8] sm:$0xff]
        %v614 = vld [vmem:[#allocation4 + $0x2f0] sm:$0xff]
        %v615 = vld [vmem:[#allocation4 + $0x2f8] sm:$0xff]
        %v616 = vld [vmem:[#allocation4 + $0x300] sm:$0xff]
        %v617 = vld [vmem:[#allocation4 + $0x308] sm:$0xff]
        %v618 = vld [vmem:[#allocation4 + $0x310] sm:$0xff]
        %v619 = vld [vmem:[#allocation4 + $0x318] sm:$0xff]
        %v620 = vld [vmem:[#allocation4 + $0x320] sm:$0xff]
        %v621 = vld [vmem:[#allocation4 + $0x328] sm:$0xff]
        %v622 = vld [vmem:[#allocation4 + $0x330] sm:$0xff]
        %v623 = vld [vmem:[#allocation4 + $0x338] sm:$0xff]
        %v624 = vld [vmem:[#allocation4 + $0x340] sm:$0xff]
        %v625 = vld [vmem:[#allocation4 + $0x348] sm:$0xff]
        %v626 = vld [vmem:[#allocation4 + $0x350] sm:$0xff]
        %v627 = vld [vmem:[#allocation4 + $0x358] sm:$0xff]
        %v628 = vld [vmem:[#allocation4 + $0x360] sm:$0xff]
        %v629 = vld [vmem:[#allocation4 + $0x368] sm:$0xff]
        %v630 = vld [vmem:[#allocation4 + $0x370] sm:$0xff]
        %v631 = vld [vmem:[#allocation4 + $0x378] sm:$0xff]
        %v632 = vld [vmem:[#allocation4 + $0x380] sm:$0xff]
        %v633 = vld [vmem:[#allocation4 + $0x388] sm:$0xff]
        %v634 = vld [vmem:[#allocation4 + $0x390] sm:$0xff]
        %v635 = vld [vmem:[#allocation4 + $0x398] sm:$0xff]
        %v636 = vld [vmem:[#allocation4 + $0x3a0] sm:$0xff]
        %v637 = vld [vmem:[#allocation4 + $0x3a8] sm:$0xff]
        %v638 = vld [vmem:[#allocation4 + $0x3b0] sm:$0xff]
        %v639 = vld [vmem:[#allocation4 + $0x3b8] sm:$0xff]
        %v640 = vld [vmem:[#allocation4 + $0x3c0] sm:$0xff]
        %v641 = vld [vmem:[#allocation4 + $0x3c8] sm:$0xff]
        %v642 = vld [vmem:[#allocation4 + $0x3d0] sm:$0xff]
        %v643 = vld [vmem:[#allocation4 + $0x3d8] sm:$0xff]
        %v644 = vld [vmem:[#allocation4 + $0x3e0] sm:$0xff]
        %v645 = vld [vmem:[#allocation4 + $0x3e8] sm:$0xff]
        %v646 = vld [vmem:[#allocation4 + $0x3f0] sm:$0xff]
        %v647 = vld [vmem:[#allocation4 + $0x3f8] sm:$0xff]
        %v776 = vunpack.c.l.b16 %v520
        %v777 = vunpack.c.h.b16 %v520
        %v778 = vunpack.c.l.b16 %v521
        %v779 = vunpack.c.h.b16 %v521
        %v780 = vunpack.c.l.b16 %v522
        %v781 = vunpack.c.h.b16 %v522
        %v782 = vunpack.c.l.b16 %v523
        %v783 = vunpack.c.h.b16 %v523
        %v784 = vunpack.c.l.b16 %v524
        %v785 = vunpack.c.h.b16 %v524
        %v786 = vunpack.c.l.b16 %v525
        %v787 = vunpack.c.h.b16 %v525
        %v788 = vunpack.c.l.b16 %v526
        %v789 = vunpack.c.h.b16 %v526
        %v790 = vunpack.c.l.b16 %v527
        %v791 = vunpack.c.h.b16 %v527
        %v792 = vunpack.c.l.b16 %v528
        %v793 = vunpack.c.h.b16 %v528
        %v794 = vunpack.c.l.b16 %v529
        %v795 = vunpack.c.h.b16 %v529
        %v796 = vunpack.c.l.b16 %v530
        %v797 = vunpack.c.h.b16 %v530
        %v798 = vunpack.c.l.b16 %v531
        %v799 = vunpack.c.h.b16 %v531
        %v800 = vunpack.c.l.b16 %v532
        %v801 = vunpack.c.h.b16 %v532
        %v802 = vunpack.c.l.b16 %v533
        %v803 = vunpack.c.h.b16 %v533
        %v804 = vunpack.c.l.b16 %v534
        %v805 = vunpack.c.h.b16 %v534
        %v806 = vunpack.c.l.b16 %v535
        %v807 = vunpack.c.h.b16 %v535
        %v808 = vunpack.c.l.b16 %v536
        %v809 = vunpack.c.h.b16 %v536
        %v810 = vunpack.c.l.b16 %v537
        %v811 = vunpack.c.h.b16 %v537
        %v812 = vunpack.c.l.b16 %v538
        %v813 = vunpack.c.h.b16 %v538
        %v814 = vunpack.c.l.b16 %v539
        %v815 = vunpack.c.h.b16 %v539
        %v816 = vunpack.c.l.b16 %v540
        %v817 = vunpack.c.h.b16 %v540
        %v818 = vunpack.c.l.b16 %v541
        %v819 = vunpack.c.h.b16 %v541
        %v820 = vunpack.c.l.b16 %v542
        %v821 = vunpack.c.h.b16 %v542
        %v822 = vunpack.c.l.b16 %v543
        %v823 = vunpack.c.h.b16 %v543
        %v824 = vunpack.c.l.b16 %v544
        %v825 = vunpack.c.h.b16 %v544
        %v826 = vunpack.c.l.b16 %v545
        %v827 = vunpack.c.h.b16 %v545
        %v828 = vunpack.c.l.b16 %v546
        %v829 = vunpack.c.h.b16 %v546
        %v830 = vunpack.c.l.b16 %v547
        %v831 = vunpack.c.h.b16 %v547
        %v832 = vunpack.c.l.b16 %v548
        %v833 = vunpack.c.h.b16 %v548
        %v834 = vunpack.c.l.b16 %v549
        %v835 = vunpack.c.h.b16 %v549
        %v836 = vunpack.c.l.b16 %v550
        %v837 = vunpack.c.h.b16 %v550
        %v838 = vunpack.c.l.b16 %v551
        %v839 = vunpack.c.h.b16 %v551
        %v840 = vunpack.c.l.b16 %v552
        %v841 = vunpack.c.h.b16 %v552
        %v842 = vunpack.c.l.b16 %v553
        %v843 = vunpack.c.h.b16 %v553
        %v844 = vunpack.c.l.b16 %v554
        %v845 = vunpack.c.h.b16 %v554
        %v846 = vunpack.c.l.b16 %v555
        %v847 = vunpack.c.h.b16 %v555
        %v848 = vunpack.c.l.b16 %v556
        %v849 = vunpack.c.h.b16 %v556
        %v850 = vunpack.c.l.b16 %v557
        %v851 = vunpack.c.h.b16 %v557
        %v852 = vunpack.c.l.b16 %v558
        %v853 = vunpack.c.h.b16 %v558
        %v854 = vunpack.c.l.b16 %v559
        %v855 = vunpack.c.h.b16 %v559
        %v856 = vunpack.c.l.b16 %v560
        %v857 = vunpack.c.h.b16 %v560
        %v858 = vunpack.c.l.b16 %v561
        %v859 = vunpack.c.h.b16 %v561
        %v860 = vunpack.c.l.b16 %v562
        %v861 = vunpack.c.h.b16 %v562
        %v862 = vunpack.c.l.b16 %v563
        %v863 = vunpack.c.h.b16 %v563
        %v864 = vunpack.c.l.b16 %v564
        %v865 = vunpack.c.h.b16 %v564
        %v866 = vunpack.c.l.b16 %v565
        %v867 = vunpack.c.h.b16 %v565
        %v868 = vunpack.c.l.b16 %v566
        %v869 = vunpack.c.h.b16 %v566
        %v870 = vunpack.c.l.b16 %v567
        %v871 = vunpack.c.h.b16 %v567
        %v872 = vunpack.c.l.b16 %v568
        %v873 = vunpack.c.h.b16 %v568
        %v874 = vunpack.c.l.b16 %v569
        %v875 = vunpack.c.h.b16 %v569
        %v876 = vunpack.c.l.b16 %v570
        %v877 = vunpack.c.h.b16 %v570
        %v878 = vunpack.c.l.b16 %v571
        %v879 = vunpack.c.h.b16 %v571
        %v880 = vunpack.c.l.b16 %v572
        %v881 = vunpack.c.h.b16 %v572
        %v882 = vunpack.c.l.b16 %v573
        %v883 = vunpack.c.h.b16 %v573
        %v884 = vunpack.c.l.b16 %v574
        %v885 = vunpack.c.h.b16 %v574
        %v886 = vunpack.c.l.b16 %v575
        %v887 = vunpack.c.h.b16 %v575
        %v888 = vunpack.c.l.b16 %v576
        %v889 = vunpack.c.h.b16 %v576
        %v890 = vunpack.c.l.b16 %v577
        %v891 = vunpack.c.h.b16 %v577
        %v892 = vunpack.c.l.b16 %v578
        %v893 = vunpack.c.h.b16 %v578
        %v894 = vunpack.c.l.b16 %v579
        %v895 = vunpack.c.h.b16 %v579
        %v896 = vunpack.c.l.b16 %v580
        %v897 = vunpack.c.h.b16 %v580
        %v898 = vunpack.c.l.b16 %v581
        %v899 = vunpack.c.h.b16 %v581
        %v900 = vunpack.c.l.b16 %v582
        %v901 = vunpack.c.h.b16 %v582
        %v902 = vunpack.c.l.b16 %v583
        %v903 = vunpack.c.h.b16 %v583
        %v904 = vunpack.c.l.b16 %v584
        %v905 = vunpack.c.h.b16 %v584
        %v906 = vunpack.c.l.b16 %v585
        %v907 = vunpack.c.h.b16 %v585
        %v908 = vunpack.c.l.b16 %v586
        %v909 = vunpack.c.h.b16 %v586
        %v910 = vunpack.c.l.b16 %v587
        %v911 = vunpack.c.h.b16 %v587
        %v912 = vunpack.c.l.b16 %v588
        %v913 = vunpack.c.h.b16 %v588
        %v914 = vunpack.c.l.b16 %v589
        %v915 = vunpack.c.h.b16 %v589
        %v916 = vunpack.c.l.b16 %v590
        %v917 = vunpack.c.h.b16 %v590
        %v918 = vunpack.c.l.b16 %v591
        %v919 = vunpack.c.h.b16 %v591
        %v920 = vunpack.c.l.b16 %v592
        %v921 = vunpack.c.h.b16 %v592
        %v922 = vunpack.c.l.b16 %v593
        %v923 = vunpack.c.h.b16 %v593
        %v924 = vunpack.c.l.b16 %v594
        %v925 = vunpack.c.h.b16 %v594
        %v926 = vunpack.c.l.b16 %v595
        %v927 = vunpack.c.h.b16 %v595
        %v928 = vunpack.c.l.b16 %v596
        %v929 = vunpack.c.h.b16 %v596
        %v930 = vunpack.c.l.b16 %v597
        %v931 = vunpack.c.h.b16 %v597
        %v932 = vunpack.c.l.b16 %v598
        %v933 = vunpack.c.h.b16 %v598
        %v934 = vunpack.c.l.b16 %v599
        %v935 = vunpack.c.h.b16 %v599
        %v936 = vunpack.c.l.b16 %v600
        %v937 = vunpack.c.h.b16 %v600
        %v938 = vunpack.c.l.b16 %v601
        %v939 = vunpack.c.h.b16 %v601
        %v940 = vunpack.c.l.b16 %v602
        %v941 = vunpack.c.h.b16 %v602
        %v942 = vunpack.c.l.b16 %v603
        %v943 = vunpack.c.h.b16 %v603
        %v944 = vunpack.c.l.b16 %v604
        %v945 = vunpack.c.h.b16 %v604
        %v946 = vunpack.c.l.b16 %v605
        %v947 = vunpack.c.h.b16 %v605
        %v948 = vunpack.c.l.b16 %v606
        %v949 = vunpack.c.h.b16 %v606
        %v950 = vunpack.c.l.b16 %v607
        %v951 = vunpack.c.h.b16 %v607
        %v952 = vunpack.c.l.b16 %v608
        %v953 = vunpack.c.h.b16 %v608
        %v954 = vunpack.c.l.b16 %v609
        %v955 = vunpack.c.h.b16 %v609
        %v956 = vunpack.c.l.b16 %v610
        %v957 = vunpack.c.h.b16 %v610
        %v958 = vunpack.c.l.b16 %v611
        %v959 = vunpack.c.h.b16 %v611
        %v960 = vunpack.c.l.b16 %v612
        %v961 = vunpack.c.h.b16 %v612
        %v962 = vunpack.c.l.b16 %v613
        %v963 = vunpack.c.h.b16 %v613
        %v964 = vunpack.c.l.b16 %v614
        %v965 = vunpack.c.h.b16 %v614
        %v966 = vunpack.c.l.b16 %v615
        %v967 = vunpack.c.h.b16 %v615
        %v968 = vunpack.c.l.b16 %v616
        %v969 = vunpack.c.h.b16 %v616
        %v970 = vunpack.c.l.b16 %v617
        %v971 = vunpack.c.h.b16 %v617
        %v972 = vunpack.c.l.b16 %v618
        %v973 = vunpack.c.h.b16 %v618
        %v974 = vunpack.c.l.b16 %v619
        %v975 = vunpack.c.h.b16 %v619
        %v976 = vunpack.c.l.b16 %v620
        %v977 = vunpack.c.h.b16 %v620
        %v978 = vunpack.c.l.b16 %v621
        %v979 = vunpack.c.h.b16 %v621
        %v980 = vunpack.c.l.b16 %v622
        %v981 = vunpack.c.h.b16 %v622
        %v982 = vunpack.c.l.b16 %v623
        %v983 = vunpack.c.h.b16 %v623
        %v984 = vunpack.c.l.b16 %v624
        %v985 = vunpack.c.h.b16 %v624
        %v986 = vunpack.c.l.b16 %v625
        %v987 = vunpack.c.h.b16 %v625
        %v988 = vunpack.c.l.b16 %v626
        %v989 = vunpack.c.h.b16 %v626
        %v990 = vunpack.c.l.b16 %v627
        %v991 = vunpack.c.h.b16 %v627
        %v992 = vunpack.c.l.b16 %v628
        %v993 = vunpack.c.h.b16 %v628
        %v994 = vunpack.c.l.b16 %v629
        %v995 = vunpack.c.h.b16 %v629
        %v996 = vunpack.c.l.b16 %v630
        %v997 = vunpack.c.h.b16 %v630
        %v998 = vunpack.c.l.b16 %v631
        %v999 = vunpack.c.h.b16 %v631
        %v1000 = vunpack.c.l.b16 %v632
        %v1001 = vunpack.c.h.b16 %v632
        %v1002 = vunpack.c.l.b16 %v633
        %v1003 = vunpack.c.h.b16 %v633
        %v1004 = vunpack.c.l.b16 %v634
        %v1005 = vunpack.c.h.b16 %v634
        %v1006 = vunpack.c.l.b16 %v635
        %v1007 = vunpack.c.h.b16 %v635
        %v1008 = vunpack.c.l.b16 %v636
        %v1009 = vunpack.c.h.b16 %v636
        %v1010 = vunpack.c.l.b16 %v637
        %v1011 = vunpack.c.h.b16 %v637
        %v1012 = vunpack.c.l.b16 %v638
        %v1013 = vunpack.c.h.b16 %v638
        %v1014 = vunpack.c.l.b16 %v639
        %v1015 = vunpack.c.h.b16 %v639
        %v1016 = vunpack.c.l.b16 %v640
        %v1017 = vunpack.c.h.b16 %v640
        %v1018 = vunpack.c.l.b16 %v641
        %v1019 = vunpack.c.h.b16 %v641
        %v1020 = vunpack.c.l.b16 %v642
        %v1021 = vunpack.c.h.b16 %v642
        %v1022 = vunpack.c.l.b16 %v643
        %v1023 = vunpack.c.h.b16 %v643
        %v1024 = vunpack.c.l.b16 %v644
        %v1025 = vunpack.c.h.b16 %v644
        %v1026 = vunpack.c.l.b16 %v645
        %v1027 = vunpack.c.h.b16 %v645
        %v1028 = vunpack.c.l.b16 %v646
        %v1029 = vunpack.c.h.b16 %v646
        %v1030 = vunpack.c.l.b16 %v647
        %v1031 = vunpack.c.h.b16 %v647
        %v1032 = vpack.c.b16 %v784, %v776
        %v1033 = vpack.c.b16 %v785, %v777
        %v1034 = vpack.c.b16 %v786, %v778
        %v1035 = vpack.c.b16 %v787, %v779
        %v1036 = vpack.c.b16 %v788, %v780
        %v1037 = vpack.c.b16 %v789, %v781
        %v1038 = vpack.c.b16 %v790, %v782
        %v1039 = vpack.c.b16 %v791, %v783
        %v1040 = vpack.c.b16 %v800, %v792
        %v1041 = vpack.c.b16 %v801, %v793
        %v1042 = vpack.c.b16 %v802, %v794
        %v1043 = vpack.c.b16 %v803, %v795
        %v1044 = vpack.c.b16 %v804, %v796
        %v1045 = vpack.c.b16 %v805, %v797
        %v1046 = vpack.c.b16 %v806, %v798
        %v1047 = vpack.c.b16 %v807, %v799
        %v1048 = vpack.c.b16 %v816, %v808
        %v1049 = vpack.c.b16 %v817, %v809
        %v1050 = vpack.c.b16 %v818, %v810
        %v1051 = vpack.c.b16 %v819, %v811
        %v1052 = vpack.c.b16 %v820, %v812
        %v1053 = vpack.c.b16 %v821, %v813
        %v1054 = vpack.c.b16 %v822, %v814
        %v1055 = vpack.c.b16 %v823, %v815
        %v1056 = vpack.c.b16 %v832, %v824
        %v1057 = vpack.c.b16 %v833, %v825
        %v1058 = vpack.c.b16 %v834, %v826
        %v1059 = vpack.c.b16 %v835, %v827
        %v1060 = vpack.c.b16 %v836, %v828
        %v1061 = vpack.c.b16 %v837, %v829
        %v1062 = vpack.c.b16 %v838, %v830
        %v1063 = vpack.c.b16 %v839, %v831
        %v1064 = vpack.c.b16 %v848, %v840
        %v1065 = vpack.c.b16 %v849, %v841
        %v1066 = vpack.c.b16 %v850, %v842
        %v1067 = vpack.c.b16 %v851, %v843
        %v1068 = vpack.c.b16 %v852, %v844
        %v1069 = vpack.c.b16 %v853, %v845
        %v1070 = vpack.c.b16 %v854, %v846
        %v1071 = vpack.c.b16 %v855, %v847
        %v1072 = vpack.c.b16 %v864, %v856
        %v1073 = vpack.c.b16 %v865, %v857
        %v1074 = vpack.c.b16 %v866, %v858
        %v1075 = vpack.c.b16 %v867, %v859
        %v1076 = vpack.c.b16 %v868, %v860
        %v1077 = vpack.c.b16 %v869, %v861
        %v1078 = vpack.c.b16 %v870, %v862
        %v1079 = vpack.c.b16 %v871, %v863
        %v1080 = vpack.c.b16 %v880, %v872
        %v1081 = vpack.c.b16 %v881, %v873
        %v1082 = vpack.c.b16 %v882, %v874
        %v1083 = vpack.c.b16 %v883, %v875
        %v1084 = vpack.c.b16 %v884, %v876
        %v1085 = vpack.c.b16 %v885, %v877
        %v1086 = vpack.c.b16 %v886, %v878
        %v1087 = vpack.c.b16 %v887, %v879
        %v1088 = vpack.c.b16 %v896, %v888
        %v1089 = vpack.c.b16 %v897, %v889
        %v1090 = vpack.c.b16 %v898, %v890
        %v1091 = vpack.c.b16 %v899, %v891
        %v1092 = vpack.c.b16 %v900, %v892
        %v1093 = vpack.c.b16 %v901, %v893
        %v1094 = vpack.c.b16 %v902, %v894
        %v1095 = vpack.c.b16 %v903, %v895
        %v1096 = vpack.c.b16 %v912, %v904
        %v1097 = vpack.c.b16 %v913, %v905
        %v1098 = vpack.c.b16 %v914, %v906
        %v1099 = vpack.c.b16 %v915, %v907
        %v1100 = vpack.c.b16 %v916, %v908
        %v1101 = vpack.c.b16 %v917, %v909
        %v1102 = vpack.c.b16 %v918, %v910
        %v1103 = vpack.c.b16 %v919, %v911
        %v1104 = vpack.c.b16 %v928, %v920
        %v1105 = vpack.c.b16 %v929, %v921
        %v1106 = vpack.c.b16 %v930, %v922
        %v1107 = vpack.c.b16 %v931, %v923
        %v1108 = vpack.c.b16 %v932, %v924
        %v1109 = vpack.c.b16 %v933, %v925
        %v1110 = vpack.c.b16 %v934, %v926
        %v1111 = vpack.c.b16 %v935, %v927
        %v1112 = vpack.c.b16 %v944, %v936
        %v1113 = vpack.c.b16 %v945, %v937
        %v1114 = vpack.c.b16 %v946, %v938
        %v1115 = vpack.c.b16 %v947, %v939
        %v1116 = vpack.c.b16 %v948, %v940
        %v1117 = vpack.c.b16 %v949, %v941
        %v1118 = vpack.c.b16 %v950, %v942
        %v1119 = vpack.c.b16 %v951, %v943
        %v1120 = vpack.c.b16 %v960, %v952
        %v1121 = vpack.c.b16 %v961, %v953
        %v1122 = vpack.c.b16 %v962, %v954
        %v1123 = vpack.c.b16 %v963, %v955
        %v1124 = vpack.c.b16 %v964, %v956
        %v1125 = vpack.c.b16 %v965, %v957
        %v1126 = vpack.c.b16 %v966, %v958
        %v1127 = vpack.c.b16 %v967, %v959
        %v1128 = vpack.c.b16 %v976, %v968
        %v1129 = vpack.c.b16 %v977, %v969
        %v1130 = vpack.c.b16 %v978, %v970
        %v1131 = vpack.c.b16 %v979, %v971
        %v1132 = vpack.c.b16 %v980, %v972
        %v1133 = vpack.c.b16 %v981, %v973
        %v1134 = vpack.c.b16 %v982, %v974
        %v1135 = vpack.c.b16 %v983, %v975
        %v1136 = vpack.c.b16 %v992, %v984
        %v1137 = vpack.c.b16 %v993, %v985
        %v1138 = vpack.c.b16 %v994, %v986
        %v1139 = vpack.c.b16 %v995, %v987
        %v1140 = vpack.c.b16 %v996, %v988
        %v1141 = vpack.c.b16 %v997, %v989
        %v1142 = vpack.c.b16 %v998, %v990
        %v1143 = vpack.c.b16 %v999, %v991
        %v1144 = vpack.c.b16 %v1008, %v1000
        %v1145 = vpack.c.b16 %v1009, %v1001
        %v1146 = vpack.c.b16 %v1010, %v1002
        %v1147 = vpack.c.b16 %v1011, %v1003
        %v1148 = vpack.c.b16 %v1012, %v1004
        %v1149 = vpack.c.b16 %v1013, %v1005
        %v1150 = vpack.c.b16 %v1014, %v1006
        %v1151 = vpack.c.b16 %v1015, %v1007
        %v1152 = vpack.c.b16 %v1024, %v1016
        %v1153 = vpack.c.b16 %v1025, %v1017
        %v1154 = vpack.c.b16 %v1026, %v1018
        %v1155 = vpack.c.b16 %v1027, %v1019
        %v1156 = vpack.c.b16 %v1028, %v1020
        %v1157 = vpack.c.b16 %v1029, %v1021
        %v1158 = vpack.c.b16 %v1030, %v1022
        %v1159 = vpack.c.b16 %v1031, %v1023
        %1288 = vmatprep.subr.bf16.mxu0 %v1089
        %1289 = vmatpush1.bf16.msra.mxu0 %v1088
        %1290 = vmatprep.subr.bf16.mxu0 %v1081
        %1291 = vmatpush1.bf16.msra.mxu0 %v1080
        %1292 = vmatprep.subr.bf16.mxu0 %v1073
        %1293 = vmatpush1.bf16.msra.mxu0 %v1072
        %1294 = vmatprep.subr.bf16.mxu0 %v1065
        %1295 = vmatpush1.bf16.msra.mxu0 %v1064
        %1296 = vmatprep.subr.bf16.mxu0 %v1057
        %1297 = vmatpush1.bf16.msra.mxu0 %v1056
        %1298 = vmatprep.subr.bf16.mxu0 %v1049
        %1299 = vmatpush1.bf16.msra.mxu0 %v1048
        %1300 = vmatprep.subr.bf16.mxu0 %v1041
        %1301 = vmatpush1.bf16.msra.mxu0 %v1040
        %1302 = vmatprep.subr.bf16.mxu0 %v1033
        %1303 = vmatpush1.bf16.msra.mxu0 %v1032
        %1304 = vmatprep.subr.bf16.mxu0 %v1153
        %1305 = vmatpush2.bf16.msra.mxu0 %v1152
        %1306 = vmatprep.subr.bf16.mxu0 %v1145
        %1307 = vmatpush2.bf16.msra.mxu0 %v1144
        %1308 = vmatprep.subr.bf16.mxu0 %v1137
        %1309 = vmatpush2.bf16.msra.mxu0 %v1136
        %1310 = vmatprep.subr.bf16.mxu0 %v1129
        %1311 = vmatpush2.bf16.msra.mxu0 %v1128
        %1312 = vmatprep.subr.bf16.mxu0 %v1121
        %1313 = vmatpush2.bf16.msra.mxu0 %v1120
        %1314 = vmatprep.subr.bf16.mxu0 %v1113
        %1315 = vmatpush2.bf16.msra.mxu0 %v1112
        %1316 = vmatprep.subr.bf16.mxu0 %v1105
        %1317 = vmatpush2.bf16.msra.mxu0 %v1104
        %1318 = vmatprep.subr.bf16.mxu0 %v1097
        %1319 = vmatpush2.bf16.msra.mxu0 %v1096
        %1320 = vmatprep.mubr.bf16.mxu0 %v519
        %1321 = vmatmul.mubr.bf16.gmra.mxu0 %v518
        %v1322 = vpop.f32.mrf.mxu0
        %v1323 = vadd.f32 0.0, %v1322
        %v1324 = vpop.f32.mrf.mxu0
        %v1325 = vadd.f32 0.0, %v1324
        %v1326 = vpop.f32.mrf.mxu0
        %v1327 = vadd.f32 0.0, %v1326
        %v1328 = vpop.f32.mrf.mxu0
        %v1329 = vadd.f32 0.0, %v1328
        %1330 = vdwg.mxu0
        %1331 = vmatprep.subr.bf16.mxu0 %v1091
        %1332 = vmatpush1.bf16.msra.mxu0 %v1090
        %1333 = vmatprep.subr.bf16.mxu0 %v1083
        %1334 = vmatpush1.bf16.msra.mxu0 %v1082
        %1335 = vmatprep.subr.bf16.mxu0 %v1075
        %1336 = vmatpush1.bf16.msra.mxu0 %v1074
        %1337 = vmatprep.subr.bf16.mxu0 %v1067
        %1338 = vmatpush1.bf16.msra.mxu0 %v1066
        %1339 = vmatprep.subr.bf16.mxu0 %v1059
        %1340 = vmatpush1.bf16.msra.mxu0 %v1058
        %1341 = vmatprep.subr.bf16.mxu0 %v1051
        %1342 = vmatpush1.bf16.msra.mxu0 %v1050
        %1343 = vmatprep.subr.bf16.mxu0 %v1043
        %1344 = vmatpush1.bf16.msra.mxu0 %v1042
        %1345 = vmatprep.subr.bf16.mxu0 %v1035
        %1346 = vmatpush1.bf16.msra.mxu0 %v1034
        %1347 = vmatprep.subr.bf16.mxu0 %v1155
        %1348 = vmatpush2.bf16.msra.mxu0 %v1154
        %1349 = vmatprep.subr.bf16.mxu0 %v1147
        %1350 = vmatpush2.bf16.msra.mxu0 %v1146
        %1351 = vmatprep.subr.bf16.mxu0 %v1139
        %1352 = vmatpush2.bf16.msra.mxu0 %v1138
        %1353 = vmatprep.subr.bf16.mxu0 %v1131
        %1354 = vmatpush2.bf16.msra.mxu0 %v1130
        %1355 = vmatprep.subr.bf16.mxu0 %v1123
        %1356 = vmatpush2.bf16.msra.mxu0 %v1122
        %1357 = vmatprep.subr.bf16.mxu0 %v1115
        %1358 = vmatpush2.bf16.msra.mxu0 %v1114
        %1359 = vmatprep.subr.bf16.mxu0 %v1107
        %1360 = vmatpush2.bf16.msra.mxu0 %v1106
        %1361 = vmatprep.subr.bf16.mxu0 %v1099
        %1362 = vmatpush2.bf16.msra.mxu0 %v1098
        %1363 = vmatprep.mubr.bf16.mxu0 %v519
        %1364 = vmatmul.mubr.bf16.gmra.mxu0 %v518
        %v1365 = vpop.f32.mrf.mxu0
        %v1366 = vadd.f32 0.0, %v1365
        %v1367 = vpop.f32.mrf.mxu0
        %v1368 = vadd.f32 0.0, %v1367
        %v1369 = vpop.f32.mrf.mxu0
        %v1370 = vadd.f32 0.0, %v1369
        %v1371 = vpop.f32.mrf.mxu0
        %v1372 = vadd.f32 0.0, %v1371
        %1373 = vdwg.mxu0
        %1374 = vmatprep.subr.bf16.mxu0 %v1093
        %1375 = vmatpush1.bf16.msra.mxu0 %v1092
        %1376 = vmatprep.subr.bf16.mxu0 %v1085
        %1377 = vmatpush1.bf16.msra.mxu0 %v1084
        %1378 = vmatprep.subr.bf16.mxu0 %v1077
        %1379 = vmatpush1.bf16.msra.mxu0 %v1076
        %1380 = vmatprep.subr.bf16.mxu0 %v1069
        %1381 = vmatpush1.bf16.msra.mxu0 %v1068
        %1382 = vmatprep.subr.bf16.mxu0 %v1061
        %1383 = vmatpush1.bf16.msra.mxu0 %v1060
        %1384 = vmatprep.subr.bf16.mxu0 %v1053
        %1385 = vmatpush1.bf16.msra.mxu0 %v1052
        %1386 = vmatprep.subr.bf16.mxu0 %v1045
        %1387 = vmatpush1.bf16.msra.mxu0 %v1044
        %1388 = vmatprep.subr.bf16.mxu0 %v1037
        %1389 = vmatpush1.bf16.msra.mxu0 %v1036
        %1390 = vmatprep.subr.bf16.mxu0 %v1157
        %1391 = vmatpush2.bf16.msra.mxu0 %v1156
        %1392 = vmatprep.subr.bf16.mxu0 %v1149
        %1393 = vmatpush2.bf16.msra.mxu0 %v1148
        %1394 = vmatprep.subr.bf16.mxu0 %v1141
        %1395 = vmatpush2.bf16.msra.mxu0 %v1140
        %1396 = vmatprep.subr.bf16.mxu0 %v1133
        %1397 = vmatpush2.bf16.msra.mxu0 %v1132
        %1398 = vmatprep.subr.bf16.mxu0 %v1125
        %1399 = vmatpush2.bf16.msra.mxu0 %v1124
        %1400 = vmatprep.subr.bf16.mxu0 %v1117
        %1401 = vmatpush2.bf16.msra.mxu0 %v1116
        %1402 = vmatprep.subr.bf16.mxu0 %v1109
        %1403 = vmatpush2.bf16.msra.mxu0 %v1108
        %1404 = vmatprep.subr.bf16.mxu0 %v1101
        %1405 = vmatpush2.bf16.msra.mxu0 %v1100
        %1406 = vmatprep.mubr.bf16.mxu0 %v519
        %1407 = vmatmul.mubr.bf16.gmra.mxu0 %v518
        %v1408 = vpop.f32.mrf.mxu0
        %v1409 = vadd.f32 0.0, %v1408
        %v1410 = vpop.f32.mrf.mxu0
        %v1411 = vadd.f32 0.0, %v1410
        %v1412 = vpop.f32.mrf.mxu0
        %v1413 = vadd.f32 0.0, %v1412
        %v1414 = vpop.f32.mrf.mxu0
        %v1415 = vadd.f32 0.0, %v1414
        %1416 = vdwg.mxu0
        %1417 = vmatprep.subr.bf16.mxu0 %v1095
        %1418 = vmatpush1.bf16.msra.mxu0 %v1094
        %1419 = vmatprep.subr.bf16.mxu0 %v1087
        %1420 = vmatpush1.bf16.msra.mxu0 %v1086
        %1421 = vmatprep.subr.bf16.mxu0 %v1079
        %1422 = vmatpush1.bf16.msra.mxu0 %v1078
        %1423 = vmatprep.subr.bf16.mxu0 %v1071
        %1424 = vmatpush1.bf16.msra.mxu0 %v1070
        %1425 = vmatprep.subr.bf16.mxu0 %v1063
        %1426 = vmatpush1.bf16.msra.mxu0 %v1062
        %1427 = vmatprep.subr.bf16.mxu0 %v1055
        %1428 = vmatpush1.bf16.msra.mxu0 %v1054
        %1429 = vmatprep.subr.bf16.mxu0 %v1047
        %1430 = vmatpush1.bf16.msra.mxu0 %v1046
        %1431 = vmatprep.subr.bf16.mxu0 %v1039
        %1432 = vmatpush1.bf16.msra.mxu0 %v1038
        %1433 = vmatprep.subr.bf16.mxu0 %v1159
        %1434 = vmatpush2.bf16.msra.mxu0 %v1158
        %1435 = vmatprep.subr.bf16.mxu0 %v1151
        %1436 = vmatpush2.bf16.msra.mxu0 %v1150
        %1437 = vmatprep.subr.bf16.mxu0 %v1143
        %1438 = vmatpush2.bf16.msra.mxu0 %v1142
        %1439 = vmatprep.subr.bf16.mxu0 %v1135
        %1440 = vmatpush2.bf16.msra.mxu0 %v1134
        %1441 = vmatprep.subr.bf16.mxu0 %v1127
        %1442 = vmatpush2.bf16.msra.mxu0 %v1126
        %1443 = vmatprep.subr.bf16.mxu0 %v1119
        %1444 = vmatpush2.bf16.msra.mxu0 %v1118
        %1445 = vmatprep.subr.bf16.mxu0 %v1111
        %1446 = vmatpush2.bf16.msra.mxu0 %v1110
        %1447 = vmatprep.subr.bf16.mxu0 %v1103
        %1448 = vmatpush2.bf16.msra.mxu0 %v1102
        %1449 = vmatprep.mubr.bf16.mxu0 %v519
        %1450 = vmatmul.mubr.bf16.gmra.mxu0 %v518
        %v1451 = vpop.f32.mrf.mxu0
        %v1452 = vadd.f32 0.0, %v1451
        %v1453 = vpop.f32.mrf.mxu0
        %v1454 = vadd.f32 0.0, %v1453
        %v1455 = vpop.f32.mrf.mxu0
        %v1456 = vadd.f32 0.0, %v1455
        %v1457 = vpop.f32.mrf.mxu0
        %v1458 = vadd.f32 0.0, %v1457
        %1459 = vdwg.mxu0
        %v1460 = vadd.f32 %v502, %v1323
        %v1461 = vadd.f32 %v503, %v1325
        %v1462 = vadd.f32 %v504, %v1366
        %v1463 = vadd.f32 %v505, %v1368
        %v1464 = vadd.f32 %v506, %v1409
        %v1465 = vadd.f32 %v507, %v1411
        %v1466 = vadd.f32 %v508, %v1452
        %v1467 = vadd.f32 %v509, %v1454
        %v1468 = vadd.f32 %v510, %v1327
        %v1469 = vadd.f32 %v511, %v1329
        %v1470 = vadd.f32 %v512, %v1370
        %v1471 = vadd.f32 %v513, %v1372
        %v1472 = vadd.f32 %v514, %v1413
        %v1473 = vadd.f32 %v515, %v1415
        %v1474 = vadd.f32 %v516, %v1456
        %v1475 = vadd.f32 %v517, %v1458
        %v1476 = vxor.u32 %v1462, 2147483648
        %v1477 = vxor.u32 %v1463, 2147483648
        %v1478 = vxor.u32 %v1470, 2147483648
        %v1479 = vxor.u32 %v1471, 2147483648
        %v1480 = vmul.f32 %v1476, 1.442695
        %v1481 = vpow.pop %v1480
        %v1482 = vmul.f32 %v1477, 1.442695
        %v1483 = vpow.pop %v1482
        %v1484 = vmul.f32 %v1478, 1.442695
        %v1485 = vpow.pop %v1484
        %v1486 = vmul.f32 %v1479, 1.442695
        %v1487 = vpow.pop %v1486
        %v1488 = vadd.f32 %v1481, 1.0
        %v1489 = vadd.f32 %v1483, 1.0
        %v1490 = vadd.f32 %v1485, 1.0
        %v1491 = vadd.f32 %v1487, 1.0
        %v1492 = vrcp.pop %v1488
        %v1493 = vmul.f32 1.0, %v1492
        %v1494 = vrcp.pop %v1489
        %v1495 = vmul.f32 1.0, %v1494
        %v1496 = vrcp.pop %v1490
        %v1497 = vmul.f32 1.0, %v1496
        %v1498 = vrcp.pop %v1491
        %v1499 = vmul.f32 1.0, %v1498
        %v1500 = vmul.f32 %v1493, %v498
        %v1501 = vmul.f32 %v1495, %v499
        %v1502 = vmul.f32 %v1497, %v500
        %v1503 = vmul.f32 %v1499, %v501
        %v1504 = vxor.u32 %v1460, 2147483648
        %v1505 = vxor.u32 %v1461, 2147483648
        %v1506 = vxor.u32 %v1468, 2147483648
        %v1507 = vxor.u32 %v1469, 2147483648
        %v1508 = vmul.f32 %v1504, 1.442695
        %v1509 = vpow.pop %v1508
        %v1510 = vmul.f32 %v1505, 1.442695
        %v1511 = vpow.pop %v1510
        %v1512 = vmul.f32 %v1506, 1.442695
        %v1513 = vpow.pop %v1512
        %v1514 = vmul.f32 %v1507, 1.442695
        %v1515 = vpow.pop %v1514
        %v1516 = vadd.f32 %v1509, 1.0
        %v1517 = vadd.f32 %v1511, 1.0
        %v1518 = vadd.f32 %v1513, 1.0
        %v1519 = vadd.f32 %v1515, 1.0
        %v1520 = vrcp.pop %v1516
        %v1521 = vmul.f32 1.0, %v1520
        %v1522 = vrcp.pop %v1517
        %v1523 = vmul.f32 1.0, %v1522
        %v1524 = vrcp.pop %v1518
        %v1525 = vmul.f32 1.0, %v1524
        %v1526 = vrcp.pop %v1519
        %v1527 = vmul.f32 1.0, %v1526
        %v1528 = vtanh.pop %v1464
        %v1529 = vtanh.pop %v1465
        %v1530 = vtanh.pop %v1472
        %v1531 = vtanh.pop %v1473
        %v1532 = vmul.f32 %v1521, %v1528
        %v1533 = vmul.f32 %v1523, %v1529
        %v1534 = vmul.f32 %v1525, %v1530
        %v1535 = vmul.f32 %v1527, %v1531
        %v1536 = vadd.f32 %v1500, %v1532
        %v1537 = vadd.f32 %v1501, %v1533
        %v1538 = vadd.f32 %v1502, %v1534
        %v1539 = vadd.f32 %v1503, %v1535
        %v1540 = vxor.u32 %v1466, 2147483648
        %v1541 = vxor.u32 %v1467, 2147483648
        %v1542 = vxor.u32 %v1474, 2147483648
        %v1543 = vxor.u32 %v1475, 2147483648
        %v1544 = vmul.f32 %v1540, 1.442695
        %v1545 = vpow.pop %v1544
        %v1546 = vmul.f32 %v1541, 1.442695
        %v1547 = vpow.pop %v1546
        %v1548 = vmul.f32 %v1542, 1.442695
        %v1549 = vpow.pop %v1548
        %v1550 = vmul.f32 %v1543, 1.442695
        %v1551 = vpow.pop %v1550
        %v1552 = vadd.f32 %v1545, 1.0
        %v1553 = vadd.f32 %v1547, 1.0
        %v1554 = vadd.f32 %v1549, 1.0
        %v1555 = vadd.f32 %v1551, 1.0
        %v1556 = vrcp.pop %v1552
        %v1557 = vmul.f32 1.0, %v1556
        %v1558 = vrcp.pop %v1553
        %v1559 = vmul.f32 1.0, %v1558
        %v1560 = vrcp.pop %v1554
        %v1561 = vmul.f32 1.0, %v1560
        %v1562 = vrcp.pop %v1555
        %v1563 = vmul.f32 1.0, %v1562
        %v1564 = vtanh.pop %v1536
        %v1565 = vtanh.pop %v1537
        %v1566 = vtanh.pop %v1538
        %v1567 = vtanh.pop %v1539
        %v1568 = vmul.f32 %v1557, %v1564
        %v1569 = vmul.f32 %v1559, %v1565
        %v1570 = vmul.f32 %v1561, %v1566
        %v1571 = vmul.f32 %v1563, %v1567
        %1572 = vst [vmem:[%s491] sm:$0xff] %v1568
        %1573 = vst [vmem:[%s491 + $0x8] sm:$0xff] %v1569
        %1574 = vst [vmem:[%s491 + $0x10] sm:$0xff] %v1570
        %1575 = vst [vmem:[%s491 + $0x18] sm:$0xff] %v1571
        %1576 = vst [vmem:[%s497] sm:$0xff] %v1536
        %1577 = vst [vmem:[%s497 + $0x8] sm:$0xff] %v1537
        %1578 = vst [vmem:[%s497 + $0x10] sm:$0xff] %v1538
        %1579 = vst [vmem:[%s497 + $0x18] sm:$0xff] %v1539
        %v1580 = vpack.c.bf16 %v1570, %v1568
        %v1581 = vpack.c.bf16 %v1571, %v1569
        %v1582 = vld [vmem:[%s4] sm:$0xf]
        %v1583 = vld [vmem:[%s4 + $0x4] sm:$0xf]
        %v1584 = vld [vmem:[%s4 + $0x8] sm:$0xf]
        %v1585 = vld [vmem:[%s4 + $0xc] sm:$0xf]
        %v1586 = vld [vmem:[%s4 + $0x10] sm:$0xf]
        %v1587 = vld [vmem:[%s4 + $0x14] sm:$0xf]
        %v1588 = vld [vmem:[%s4 + $0x18] sm:$0xf]
        %v1589 = vld [vmem:[%s4 + $0x1c] sm:$0xf]
        %v1590 = vld [vmem:[%s4 + $0x20] sm:$0xf]
        %v1591 = vld [vmem:[%s4 + $0x24] sm:$0xf]
        %v1592 = vld [vmem:[%s4 + $0x28] sm:$0xf]
        %v1593 = vld [vmem:[%s4 + $0x2c] sm:$0xf]
        %v1594 = vld [vmem:[%s4 + $0x30] sm:$0xf]
        %v1595 = vld [vmem:[%s4 + $0x34] sm:$0xf]
        %v1596 = vld [vmem:[%s4 + $0x38] sm:$0xf]
        %v1597 = vld [vmem:[%s4 + $0x3c] sm:$0xf]
        %v1598 = vld [vmem:[%s4 + $0x40] sm:$0xf]
        %v1599 = vld [vmem:[%s4 + $0x44] sm:$0xf]
        %v1600 = vld [vmem:[%s4 + $0x48] sm:$0xf]
        %v1601 = vld [vmem:[%s4 + $0x4c] sm:$0xf]
        %v1602 = vld [vmem:[%s4 + $0x50] sm:$0xf]
        %v1603 = vld [vmem:[%s4 + $0x54] sm:$0xf]
        %v1604 = vld [vmem:[%s4 + $0x58] sm:$0xf]
        %v1605 = vld [vmem:[%s4 + $0x5c] sm:$0xf]
        %v1606 = vld [vmem:[%s4 + $0x60] sm:$0xf]
        %v1607 = vld [vmem:[%s4 + $0x64] sm:$0xf]
        %v1608 = vld [vmem:[%s4 + $0x68] sm:$0xf]
        %v1609 = vld [vmem:[%s4 + $0x6c] sm:$0xf]
        %v1610 = vld [vmem:[%s4 + $0x70] sm:$0xf]
        %v1611 = vld [vmem:[%s4 + $0x74] sm:$0xf]
        %v1612 = vld [vmem:[%s4 + $0x78] sm:$0xf]
        %v1613 = vld [vmem:[%s4 + $0x7c] sm:$0xf]
        %v1614 = vpack.c.bf16 %v1538, %v1536
        %v1615 = vpack.c.bf16 %v1539, %v1537
        %v1616 = vld [vmem:[%s5] sm:$0xf]
        %v1617 = vld [vmem:[%s5 + $0x4] sm:$0xf]
        %v1618 = vld [vmem:[%s5 + $0x8] sm:$0xf]
        %v1619 = vld [vmem:[%s5 + $0xc] sm:$0xf]
        %v1620 = vld [vmem:[%s5 + $0x10] sm:$0xf]
        %v1621 = vld [vmem:[%s5 + $0x14] sm:$0xf]
        %v1622 = vld [vmem:[%s5 + $0x18] sm:$0xf]
        %v1623 = vld [vmem:[%s5 + $0x1c] sm:$0xf]
        %v1624 = vld [vmem:[%s5 + $0x20] sm:$0xf]
        %v1625 = vld [vmem:[%s5 + $0x24] sm:$0xf]
        %v1626 = vld [vmem:[%s5 + $0x28] sm:$0xf]
        %v1627 = vld [vmem:[%s5 + $0x2c] sm:$0xf]
        %v1628 = vld [vmem:[%s5 + $0x30] sm:$0xf]
        %v1629 = vld [vmem:[%s5 + $0x34] sm:$0xf]
        %v1630 = vld [vmem:[%s5 + $0x38] sm:$0xf]
        %v1631 = vld [vmem:[%s5 + $0x3c] sm:$0xf]
        %v1632 = vld [vmem:[%s5 + $0x40] sm:$0xf]
        %v1633 = vld [vmem:[%s5 + $0x44] sm:$0xf]
        %v1634 = vld [vmem:[%s5 + $0x48] sm:$0xf]
        %v1635 = vld [vmem:[%s5 + $0x4c] sm:$0xf]
        %v1636 = vld [vmem:[%s5 + $0x50] sm:$0xf]
        %v1637 = vld [vmem:[%s5 + $0x54] sm:$0xf]
        %v1638 = vld [vmem:[%s5 + $0x58] sm:$0xf]
        %v1639 = vld [vmem:[%s5 + $0x5c] sm:$0xf]
        %v1640 = vld [vmem:[%s5 + $0x60] sm:$0xf]
        %v1641 = vld [vmem:[%s5 + $0x64] sm:$0xf]
        %v1642 = vld [vmem:[%s5 + $0x68] sm:$0xf]
        %v1643 = vld [vmem:[%s5 + $0x6c] sm:$0xf]
        %v1644 = vld [vmem:[%s5 + $0x70] sm:$0xf]
        %v1645 = vld [vmem:[%s5 + $0x74] sm:$0xf]
        %v1646 = vld [vmem:[%s5 + $0x78] sm:$0xf]
        %v1647 = vld [vmem:[%s5 + $0x7c] sm:$0xf]
        %v1680 = vunpack.c.l.b16 %v1616
        %v1681 = vunpack.c.l.b16 %v1617
        %v1682 = vunpack.c.l.b16 %v1618
        %v1683 = vunpack.c.l.b16 %v1619
        %v1684 = vunpack.c.l.b16 %v1620
        %v1685 = vunpack.c.l.b16 %v1621
        %v1686 = vunpack.c.l.b16 %v1622
        %v1687 = vunpack.c.l.b16 %v1623
        %v1688 = vunpack.c.l.b16 %v1624
        %v1689 = vunpack.c.l.b16 %v1625
        %v1690 = vunpack.c.l.b16 %v1626
        %v1691 = vunpack.c.l.b16 %v1627
        %v1692 = vunpack.c.l.b16 %v1628
        %v1693 = vunpack.c.l.b16 %v1629
        %v1694 = vunpack.c.l.b16 %v1630
        %v1695 = vunpack.c.l.b16 %v1631
        %v1696 = vunpack.c.l.b16 %v1632
        %v1697 = vunpack.c.l.b16 %v1633
        %v1698 = vunpack.c.l.b16 %v1634
        %v1699 = vunpack.c.l.b16 %v1635
        %v1700 = vunpack.c.l.b16 %v1636
        %v1701 = vunpack.c.l.b16 %v1637
        %v1702 = vunpack.c.l.b16 %v1638
        %v1703 = vunpack.c.l.b16 %v1639
        %v1704 = vunpack.c.l.b16 %v1640
        %v1705 = vunpack.c.l.b16 %v1641
        %v1706 = vunpack.c.l.b16 %v1642
        %v1707 = vunpack.c.l.b16 %v1643
        %v1708 = vunpack.c.l.b16 %v1644
        %v1709 = vunpack.c.l.b16 %v1645
        %v1710 = vunpack.c.l.b16 %v1646
        %v1711 = vunpack.c.l.b16 %v1647
        %v1712 = vpack.c.b16 %v1681, %v1680
        %v1713 = vpack.c.b16 %v1683, %v1682
        %v1714 = vpack.c.b16 %v1685, %v1684
        %v1715 = vpack.c.b16 %v1687, %v1686
        %v1716 = vpack.c.b16 %v1689, %v1688
        %v1717 = vpack.c.b16 %v1691, %v1690
        %v1718 = vpack.c.b16 %v1693, %v1692
        %v1719 = vpack.c.b16 %v1695, %v1694
        %v1720 = vpack.c.b16 %v1697, %v1696
        %v1721 = vpack.c.b16 %v1699, %v1698
        %v1722 = vpack.c.b16 %v1701, %v1700
        %v1723 = vpack.c.b16 %v1703, %v1702
        %v1724 = vpack.c.b16 %v1705, %v1704
        %v1725 = vpack.c.b16 %v1707, %v1706
        %v1726 = vpack.c.b16 %v1709, %v1708
        %v1727 = vpack.c.b16 %v1711, %v1710
        %1744 = vmatprep.subr.bf16.mxu0 0
        %1745 = vmatpush1.bf16.msra.mxu0 %v1719
        %1746 = vmatprep.subr.bf16.mxu0 0
        %1747 = vmatpush1.bf16.msra.mxu0 %v1718
        %1748 = vmatprep.subr.bf16.mxu0 0
        %1749 = vmatpush1.bf16.msra.mxu0 %v1717
        %1750 = vmatprep.subr.bf16.mxu0 0
        %1751 = vmatpush1.bf16.msra.mxu0 %v1716
        %1752 = vmatprep.subr.bf16.mxu0 0
        %1753 = vmatpush1.bf16.msra.mxu0 %v1715
        %1754 = vmatprep.subr.bf16.mxu0 0
        %1755 = vmatpush1.bf16.msra.mxu0 %v1714
        %1756 = vmatprep.subr.bf16.mxu0 0
        %1757 = vmatpush1.bf16.msra.mxu0 %v1713
        %1758 = vmatprep.subr.bf16.mxu0 0
        %1759 = vmatpush1.bf16.msra.mxu0 %v1712
        %1760 = vmatprep.subr.bf16.mxu0 0
        %1761 = vmatpush2.bf16.msra.mxu0 %v1727
        %1762 = vmatprep.subr.bf16.mxu0 0
        %1763 = vmatpush2.bf16.msra.mxu0 %v1726
        %1764 = vmatprep.subr.bf16.mxu0 0
        %1765 = vmatpush2.bf16.msra.mxu0 %v1725
        %1766 = vmatprep.subr.bf16.mxu0 0
        %1767 = vmatpush2.bf16.msra.mxu0 %v1724
        %1768 = vmatprep.subr.bf16.mxu0 0
        %1769 = vmatpush2.bf16.msra.mxu0 %v1723
        %1770 = vmatprep.subr.bf16.mxu0 0
        %1771 = vmatpush2.bf16.msra.mxu0 %v1722
        %1772 = vmatprep.subr.bf16.mxu0 0
        %1773 = vmatpush2.bf16.msra.mxu0 %v1721
        %1774 = vmatprep.subr.bf16.mxu0 0
        %1775 = vmatpush2.bf16.msra.mxu0 %v1720
        %1776 = vmatprep.mubr.bf16.mxu0 %v1615
        %1777 = vmatmul.mubr.bf16.gmra.mxu0 %v1614
        %v1778 = vpop.f32.mrf.mxu0
        %v1779 = vadd.f32 0.0, %v1778
        %v1780 = vpop.f32.mrf.mxu0
        %v1781 = vpop.f32.mrf.mxu0
        %v1782 = vadd.f32 0.0, %v1781
        %v1783 = vpop.f32.mrf.mxu0
        %1784 = vdwg.mxu0
        %v1817 = vunpack.c.l.b16 %v1582
        %v1818 = vunpack.c.l.b16 %v1583
        %v1819 = vunpack.c.l.b16 %v1584
        %v1820 = vunpack.c.l.b16 %v1585
        %v1821 = vunpack.c.l.b16 %v1586
        %v1822 = vunpack.c.l.b16 %v1587
        %v1823 = vunpack.c.l.b16 %v1588
        %v1824 = vunpack.c.l.b16 %v1589
        %v1825 = vunpack.c.l.b16 %v1590
        %v1826 = vunpack.c.l.b16 %v1591
        %v1827 = vunpack.c.l.b16 %v1592
        %v1828 = vunpack.c.l.b16 %v1593
        %v1829 = vunpack.c.l.b16 %v1594
        %v1830 = vunpack.c.l.b16 %v1595
        %v1831 = vunpack.c.l.b16 %v1596
        %v1832 = vunpack.c.l.b16 %v1597
        %v1833 = vunpack.c.l.b16 %v1598
        %v1834 = vunpack.c.l.b16 %v1599
        %v1835 = vunpack.c.l.b16 %v1600
        %v1836 = vunpack.c.l.b16 %v1601
        %v1837 = vunpack.c.l.b16 %v1602
        %v1838 = vunpack.c.l.b16 %v1603
        %v1839 = vunpack.c.l.b16 %v1604
        %v1840 = vunpack.c.l.b16 %v1605
        %v1841 = vunpack.c.l.b16 %v1606
        %v1842 = vunpack.c.l.b16 %v1607
        %v1843 = vunpack.c.l.b16 %v1608
        %v1844 = vunpack.c.l.b16 %v1609
        %v1845 = vunpack.c.l.b16 %v1610
        %v1846 = vunpack.c.l.b16 %v1611
        %v1847 = vunpack.c.l.b16 %v1612
        %v1848 = vunpack.c.l.b16 %v1613
        %v1849 = vpack.c.b16 %v1818, %v1817
        %v1850 = vpack.c.b16 %v1820, %v1819
        %v1851 = vpack.c.b16 %v1822, %v1821
        %v1852 = vpack.c.b16 %v1824, %v1823
        %v1853 = vpack.c.b16 %v1826, %v1825
        %v1854 = vpack.c.b16 %v1828, %v1827
        %v1855 = vpack.c.b16 %v1830, %v1829
        %v1856 = vpack.c.b16 %v1832, %v1831
        %v1857 = vpack.c.b16 %v1834, %v1833
        %v1858 = vpack.c.b16 %v1836, %v1835
        %v1859 = vpack.c.b16 %v1838, %v1837
        %v1860 = vpack.c.b16 %v1840, %v1839
        %v1861 = vpack.c.b16 %v1842, %v1841
        %v1862 = vpack.c.b16 %v1844, %v1843
        %v1863 = vpack.c.b16 %v1846, %v1845
        %v1864 = vpack.c.b16 %v1848, %v1847
        %1881 = vmatprep.subr.bf16.mxu0 0
        %1882 = vmatpush1.bf16.msra.mxu0 %v1856
        %1883 = vmatprep.subr.bf16.mxu0 0
        %1884 = vmatpush1.bf16.msra.mxu0 %v1855
        %1885 = vmatprep.subr.bf16.mxu0 0
        %1886 = vmatpush1.bf16.msra.mxu0 %v1854
        %1887 = vmatprep.subr.bf16.mxu0 0
        %1888 = vmatpush1.bf16.msra.mxu0 %v1853
        %1889 = vmatprep.subr.bf16.mxu0 0
        %1890 = vmatpush1.bf16.msra.mxu0 %v1852
        %1891 = vmatprep.subr.bf16.mxu0 0
        %1892 = vmatpush1.bf16.msra.mxu0 %v1851
        %1893 = vmatprep.subr.bf16.mxu0 0
        %1894 = vmatpush1.bf16.msra.mxu0 %v1850
        %1895 = vmatprep.subr.bf16.mxu0 0
        %1896 = vmatpush1.bf16.msra.mxu0 %v1849
        %1897 = vmatprep.subr.bf16.mxu0 0
        %1898 = vmatpush2.bf16.msra.mxu0 %v1864
        %1899 = vmatprep.subr.bf16.mxu0 0
        %1900 = vmatpush2.bf16.msra.mxu0 %v1863
        %1901 = vmatprep.subr.bf16.mxu0 0
        %1902 = vmatpush2.bf16.msra.mxu0 %v1862
        %1903 = vmatprep.subr.bf16.mxu0 0
        %1904 = vmatpush2.bf16.msra.mxu0 %v1861
        %1905 = vmatprep.subr.bf16.mxu0 0
        %1906 = vmatpush2.bf16.msra.mxu0 %v1860
        %1907 = vmatprep.subr.bf16.mxu0 0
        %1908 = vmatpush2.bf16.msra.mxu0 %v1859
        %1909 = vmatprep.subr.bf16.mxu0 0
        %1910 = vmatpush2.bf16.msra.mxu0 %v1858
        %1911 = vmatprep.subr.bf16.mxu0 0
        %1912 = vmatpush2.bf16.msra.mxu0 %v1857
        %1913 = vmatprep.mubr.bf16.mxu0 %v1581
        %1914 = vmatmul.mubr.bf16.gmra.mxu0 %v1580
        %v1915 = vpop.f32.mrf.mxu0
        %v1916 = vadd.f32 %v1779, %v1915
        %v1917 = vpop.f32.mrf.mxu0
        %v1918 = vpop.f32.mrf.mxu0
        %v1919 = vadd.f32 %v1782, %v1918
        %v1920 = vpop.f32.mrf.mxu0
        %1921 = vdwg.mxu0
        %v1922 = vld [vmem:[%s6] sm:$0x1]
        %v1924 = vlaneseq
        %v1925 = vshrl.u32 %v1924, 7
        %v1926 = vsub.s32 0, %v1925
        %v1927 = vrot.slane %v1922, %v1926
        %v1929 = vadd.f32 %v1916, %v1927
        %v1930 = vadd.f32 %v1919, %v1927
        %1931 = vst [vmem:[%s457] sm:$0xff] %v1929
        %1932 = vst [vmem:[%s457 + $0x8] sm:$0xff] %v1930
        // Predicated region
        $region57: #{reduction_actor_critic_forward.3} parent=47 // pred_check
          %p1933 = pneg %p464
        $region58: #{reduction_actor_critic_forward.3} parent=47 // pred_check_branch
          %1935 = sbr.rel (%p1933) target = $region60
        $region59: #{reduction_actor_critic_forward.3} parent=47 // pred_region
          %1936 = vst [vmem:[%s418] sm:$0xff] %v1568
          %1937 = vst [vmem:[%s418 + $0x8] sm:$0xff] %v1569
          %1938 = vst [vmem:[%s418 + $0x10] sm:$0xff] %v1570
          %1939 = vst [vmem:[%s418 + $0x18] sm:$0xff] %v1571
          %1940 = vst [vmem:[%s425] sm:$0xff] %v1536
          %1941 = vst [vmem:[%s425 + $0x8] sm:$0xff] %v1537
          %1942 = vst [vmem:[%s425 + $0x10] sm:$0xff] %v1538
          %1943 = vst [vmem:[%s425 + $0x18] sm:$0xff] %v1539
        $region60: #{reduction_actor_critic_forward.3} parent=47 // pred_fallthru
          _
        %s1944 = smul.u32 %s33, 2
        %s1945 = sadd.s32 %s1944, %s32
        %s1946 = smul.u32 2, %s1945
        %p1947 = scmp.lt.s32.totalorder %s1946, 3
        %s1948 = scalar_select %p1947, %s1946, 3
        %s1949 = smul.addr %s1948, 8
        %s1950 = scalar_lea.vmem %s7, %s1949
        %s1951 = sand.u32 %s244, 1
        %s1952 = scalar_lea.sflag [#allocation6], %s1951
        %s1953 = sand.u32 %s244, 1
        %s1954 = smul.addr %s1953, 32
        %s1955 = scalar_lea.vmem [#allocation7], %s1954
        %s1956 = sand.u32 %s270, 1
        %s1957 = scalar_lea.sflag [#allocation9], %s1956
        %s1958 = sand.u32 %s270, 1
        %s1959 = smul.addr %s1958, 32
        %s1960 = scalar_lea.vmem [#allocation8], %s1959
        // Predicated region
        $region61: #{reduction_actor_critic_forward.3} parent=47 // pred_check
          %p1961 = pneg %p228
        $region62: #{reduction_actor_critic_forward.3} parent=47 // pred_check_branch
          %1963 = sbr.rel (%p1961) target = $region64
        $region63: #{reduction_actor_critic_forward.3} parent=47 // pred_region
          %s1964 = smul.u32 %s33, 2
          %s1965 = sadd.s32 %s1964, %s32
          %s1966 = smul.u32 2, %s1965
        $region64: #{reduction_actor_critic_forward.3} parent=47 // pred_fallthru
          _
        // Predicated region
        $region65: #{reduction_actor_critic_forward.3} parent=47 // pred_check
          %p1967 = pneg %p254
        $region66: #{reduction_actor_critic_forward.3} parent=47 // pred_check_branch
          %1969 = sbr.rel (%p1967) target = $region68
        $region67: #{reduction_actor_critic_forward.3} parent=47 // pred_region
          %s1970 = smul.u32 2, %s32
          %s1972 = ssub.s32 512, 512
          %1973 = vsyncadd %s1952, %s1972
          %s1974 = smul.addr %s1970, 2
          %s1975 = smul.addr %s1974, 128
          %s1976 = scalar_lea.hbm %s8, %s1975
          %s1977 = sshll.u32 %s1955, 4
          %s1978 = int_to_ptr.vmem [resolvable:$true] %s1977
          %1983 = dma.vmem_to_hbm [thread:$0]  %s1978, 512, %s1976, %s1952, 256, 256, 16
        $region68: #{reduction_actor_critic_forward.3} parent=47 // pred_fallthru
          _
        // Predicated region
        $region69: #{reduction_actor_critic_forward.3} parent=47 // pred_check
          %p1984 = pneg %p280
        $region70: #{reduction_actor_critic_forward.3} parent=47 // pred_check_branch
          %1986 = sbr.rel (%p1984) target = $region72
        $region71: #{reduction_actor_critic_forward.3} parent=47 // pred_region
          %s1987 = smul.u32 2, %s32
          %s1989 = ssub.s32 512, 512
          %1990 = vsyncadd %s1957, %s1989
          %s1991 = smul.addr %s1987, 2
          %s1992 = smul.addr %s1991, 128
          %s1993 = scalar_lea.hbm %s9, %s1992
          %s1994 = sshll.u32 %s1960, 4
          %s1995 = int_to_ptr.vmem [resolvable:$true] %s1994
          %2000 = dma.vmem_to_hbm [thread:$0]  %s1995, 512, %s1993, %s1957, 256, 256, 16
        $region72: #{reduction_actor_critic_forward.3} parent=47 // pred_fallthru
          _
      $region48: #{reduction_actor_critic_forward.3} parent=5 // pred_fallthru
        _
      %p2001 = scmp.le.s32.totalorder 2, %s23
      // Predicated region
      $region73: #{reduction_actor_critic_forward.3} parent=5 // pred_check
        %p2002 = pneg %p2001
      $region74: #{reduction_actor_critic_forward.3} parent=5 // pred_check_branch
        %2004 = sbr.rel (%p2002) target = $region76
      $region75: #{reduction_actor_critic_forward.3} parent=5 // pred_region
        %s2005 = ssub.s32 %s23, 2
        // Predicated region
        $region77: #{reduction_actor_critic_forward.3} parent=75 // pred_check
          %p2006 = pneg %p234
        $region78: #{reduction_actor_critic_forward.3} parent=75 // pred_check_branch
          %2008 = sbr.rel (%p2006) target = $region80
        $region79: #{reduction_actor_critic_forward.3} parent=75 // pred_region
          %s2009 = smul.u32 %s35, 2
          %s2010 = sadd.s32 %s2009, %s34
          %s2011 = smul.u32 2, %s2010
          %p2012 = scmp.lt.s32.totalorder %s2011, 3
          %s2013 = scalar_select %p2012, %s2011, 3
          %s2014 = smul.addr %s2013, 8
          %s2015 = scalar_lea.vmem %s7, %s2014
        $region80: #{reduction_actor_critic_forward.3} parent=75 // pred_fallthru
          _
        // Predicated region
        $region81: #{reduction_actor_critic_forward.3} parent=75 // pred_check
          %p2016 = pneg %p260
        $region82: #{reduction_actor_critic_forward.3} parent=75 // pred_check_branch
          %2018 = sbr.rel (%p2016) target = $region84
        $region83: #{reduction_actor_critic_forward.3} parent=75 // pred_region
          %s2019 = sand.u32 %s245, 1
          %s2020 = scalar_lea.sflag [#allocation6], %s2019
          %s2021 = sand.u32 %s245, 1
          %s2022 = smul.addr %s2021, 32
          %s2023 = scalar_lea.vmem [#allocation7], %s2022
          %2024 = dma.done %s2020, 512
        $region84: #{reduction_actor_critic_forward.3} parent=75 // pred_fallthru
          _
        // Predicated region
        $region85: #{reduction_actor_critic_forward.3} parent=75 // pred_check
          %p2025 = pneg %p286
        $region86: #{reduction_actor_critic_forward.3} parent=75 // pred_check_branch
          %2027 = sbr.rel (%p2025) target = $region88
        $region87: #{reduction_actor_critic_forward.3} parent=75 // pred_region
          %s2028 = sand.u32 %s271, 1
          %s2029 = scalar_lea.sflag [#allocation9], %s2028
          %s2030 = sand.u32 %s271, 1
          %s2031 = smul.addr %s2030, 32
          %s2032 = scalar_lea.vmem [#allocation8], %s2031
          %2033 = dma.done %s2029, 512
        $region88: #{reduction_actor_critic_forward.3} parent=75 // pred_fallthru
          _
      $region76: #{reduction_actor_critic_forward.3} parent=5 // pred_fallthru
        _
    $region6: #{reduction_actor_critic_forward.3} parent=1 // loop_footer
      %s27 = sadd.s32 1, %s23
    $region7: #{reduction_actor_critic_forward.3} parent=1 // loop_footer_branch
      %22 = sbr.rel target = $region3
    $region8: #{reduction_actor_critic_forward.3} parent=1 // loop_exit
      _
    %2034 = vsyncpa [#allocation5], 1
    %s2035 = scalar_lea.sflag [#allocation5], 1
    %2036 = vsyncpa %s2035, 1
    %2037 = vsyncpa [#allocation6], 1
    %s2038 = scalar_lea.sflag [#allocation6], 1
    %2039 = vsyncpa %s2038, 1
    %2040 = vsyncpa [#allocation9], 1
    %s2041 = scalar_lea.sflag [#allocation9], 1
    %2042 = vsyncpa %s2041, 1

</llo_original>
